<compile_context>
chip_gen: v5e
topology: v5e:2x2
jax: 0.10.0
libtpu: 0.0.40
codegen_flags: <defaults>
</compile_context>

<pallas_src>
import functools

import numpy as np
import jax
import jax.numpy as jnp
from jax.experimental import pallas as pl
from jax.experimental.pallas import tpu as pltpu


def _round_up(x, m):
    return ((x + m - 1) // m) * m


# ----------------------------------------------------------------------------
# Pallas kernel: fully fused stack of  h = relu?(h @ W_l + b_l)
# ----------------------------------------------------------------------------
def _fused_forward_kernel(*refs, num_layers, relu_flags):
    x_ref = refs[0]
    o_ref = refs[-1]
    wb_refs = refs[1:-1]                              # (w0, b0, w1, b1, ...)
    h = x_ref[...].astype(jnp.float32)
    for l in range(num_layers):                       # unrolled at trace time
        w = wb_refs[2 * l][...]
        b = wb_refs[2 * l + 1][...]                   # (1, N) broadcasts over rows
        h = jnp.dot(h, w, preferred_element_type=jnp.float32) + b
        if relu_flags[l]:
            h = jnp.maximum(h, 0.0)
    o_ref[...] = h.astype(o_ref.dtype)


def fused_forward_pallas(xp, layers, tile_m):
    """xp: (Mp, D0p) padded input.  layers: tuple of (w_padded, b_padded, relu)."""
    Mp, D0p = xp.shape
    assert Mp % tile_m == 0
    grid_m = Mp // tile_m
    num_layers = len(layers)
    relu_flags = tuple(bool(r) for (_, _, r) in layers)
    d_out = layers[-1][0].shape[1]

    in_specs = [pl.BlockSpec((tile_m, D0p), lambda i: (i, 0))]
    operands = [xp]
    for (w, b, _) in layers:
        # Full (already 8x128-aligned) weight/bias blocks; block index is
        # constant across the grid -> DMA'd into VMEM once and kept resident.
        in_specs.append(pl.BlockSpec(w.shape, lambda i: (0, 0)))
        in_specs.append(pl.BlockSpec(b.shape, lambda i: (0, 0)))
        operands.extend([w, b])

    kernel = functools.partial(_fused_forward_kernel,
                               num_layers=num_layers, relu_flags=relu_flags)
    return pl.pallas_call(
        kernel,
        out_shape=jax.ShapeDtypeStruct((Mp, d_out), xp.dtype),
        grid=(grid_m,),
        in_specs=in_specs,
        out_specs=pl.BlockSpec((tile_m, d_out), lambda i: (i, 0)),
        compiler_params=pltpu.CompilerParams(
            dimension_semantics=("parallel",)),
    )(*operands)


# ----------------------------------------------------------------------------
# One-time parameter folding: conv tower -> equivalent dense matmuls
# ----------------------------------------------------------------------------
def _conv_to_dense(w, b, in_chw, stride):
    """Fold Conv2d(kernel, stride, VALID) into an equivalent dense matmul.

    Input rows follow the NCHW flatten order (ci*H*W + h*W + w); output columns
    follow the NCHW flatten order of the conv output (co*OH*OW + oh*OW + ow),
    so chaining folded convs with the original dense head reproduces PyTorch's
    x.view(N, -1) semantics with no transposes anywhere.
    """
    Cout, Cin, KH, KW = w.shape
    C, H, W = in_chw
    assert C == Cin
    OH = (H - KH) // stride + 1
    OW = (W - KW) // stride + 1
    co, ci, ki, kj, oh, ow = np.meshgrid(
        np.arange(Cout), np.arange(Cin), np.arange(KH), np.arange(KW),
        np.arange(OH), np.arange(OW), indexing='ij')
    rows = (ci * (H * W) + (stride * oh + ki) * W + (stride * ow + kj)).ravel()
    cols = (co * (OH * OW) + oh * OW + ow).ravel()
    vals = jnp.broadcast_to(w[:, :, :, :, None, None],
                            (Cout, Cin, KH, KW, OH, OW)).ravel()
    big_w = jnp.zeros((Cin * H * W, Cout * OH * OW), jnp.float32)
    big_w = big_w.at[rows, cols].set(vals)
    big_b = jnp.repeat(b, OH * OW)
    return big_w, big_b, (Cout, OH, OW)


def fold_and_pad_params(params, input_chw):
    """Fold convs to dense matmuls and zero-pad all layers to (8,128) multiples."""
    layers = []
    shape = input_chw
    for (w, b) in params['conv']:
        bw, bb, shape = _conv_to_dense(w, b, shape, stride=2)
        layers.append((bw, bb, True))
    flat_dim = int(np.prod(shape))
    n_dense = len(params['dense'])
    assert params['dense'][0][0].shape[0] == flat_dim
    for idx, (w, b) in enumerate(params['dense']):
        layers.append((w.astype(jnp.float32), b.astype(jnp.float32),
                       idx < n_dense - 1))

    dims = [layers[0][0].shape[0]] + [w.shape[1] for (w, _, _) in layers]
    pdims = [_round_up(d, 128) for d in dims]                 # lane-dense feature dims
    padded = []
    for l, (w, b, relu) in enumerate(layers):
        wp = jnp.zeros((pdims[l], pdims[l + 1]), jnp.float32)
        wp = wp.at[:w.shape[0], :w.shape[1]].set(w)
        bp = jnp.zeros((1, pdims[l + 1]), jnp.float32)
        bp = bp.at[0, :b.shape[0]].set(b)
        padded.append((wp, bp, bool(relu)))
    return tuple(padded)


def make_forward_fn(folded_layers, n_action):
    """Per-call hot path: concat + NCHW flatten + pad + one fused pallas_call."""
    D0p = folded_layers[0][0].shape[0]

    @jax.jit
    def forward(env_state, objective):
        x = jnp.concatenate([env_state, objective], axis=1)   # NCHW
        B = x.shape[0]
        x = x.reshape(B, -1)                                   # NCHW flatten order
        TM = 128
        if B <= TM:
            Mp = max(8, _round_up(B, 8))
            tile_m = Mp
        else:
            Mp = _round_up(B, TM)
            tile_m = TM
        xp = jnp.zeros((Mp, D0p), x.dtype).at[:B, :x.shape[1]].set(x)
        out_p = fused_forward_pallas(xp, folded_layers, tile_m)
        return out_p[:B, :n_action]

    return forward


# ----------------------------------------------------------------------------
# Deterministic parameter init (shapes per DQN.__init__)
# ----------------------------------------------------------------------------
def init_params(key, n_channels_total, input_hw, conv_shapes, dense_shapes, n_action):
    params = {'conv': [], 'dense': []}
    cin = n_channels_total
    h, w = input_hw
    for idx, cout in enumerate(conv_shapes):
        k = 3 if idx == 0 else 5
        key, k1, k2 = jax.random.split(key, 3)
        wc = jax.random.normal(k1, (cout, cin, k, k), jnp.float32) * 0.05
        bc = jax.random.normal(k2, (cout,), jnp.float32) * 0.05
        params['conv'].append((wc, bc))
        cin = cout
        h = (h - k) // 2 + 1
        w = (w - k) // 2 + 1
    flat = cin * h * w
    d_in = flat
    for d_out in list(dense_shapes) + [n_action]:
        key, k1, k2 = jax.random.split(key, 3)
        wd = jax.random.normal(k1, (d_in, d_out), jnp.float32) * 0.05
        bd = jax.random.normal(k2, (d_out,), jnp.float32) * 0.05
        params['dense'].append((wd, bd))
        d_in = d_out
    return params


# ----------------------------------------------------------------------------
# Pure-JAX reference (unfolded conv + dense) for validation
# ----------------------------------------------------------------------------
def reference_forward(params, env_state, objective):
    x = jnp.concatenate([env_state, objective], axis=1)  # NCHW
    for (w, b) in params['conv']:
        x = jax.lax.conv_general_dilated(
            x, w, window_strides=(2, 2), padding='VALID',
            dimension_numbers=('NCHW', 'OIHW', 'NCHW'))
        x = jax.nn.relu(x + b.reshape(1, -1, 1, 1))
    x = x.reshape(x.shape[0], -1)
    for idx, (w, b) in enumerate(params['dense']):
        x = x @ w + b
        if idx < len(params['dense']) - 1:
            x = jax.nn.relu(x)
    return x


if __name__ == "__main__":
    key = jax.random.PRNGKey(0)

    batch = 2
    env_channels, obj_channels = 3, 1
    n_channels_total = env_channels + obj_channels       # state_dim['concatenated'][0]
    input_hw = (16, 16)                                   # state_dim['concatenated'][1:]
    conv_shapes = [8, 16]
    dense_shapes = [32]
    n_action = 4

    key, kp, ke, ko = jax.random.split(key, 4)
    params = init_params(kp, n_channels_total, input_hw, conv_shapes,
                         dense_shapes, n_action)
    env_state = jax.random.normal(ke, (batch, env_channels) + input_hw, jnp.float32)
    objective = jax.random.normal(ko, (batch, obj_channels) + input_hw, jnp.float32)

    # One-time fold/pad of the parameters (outside the per-step hot path).
    folded = fold_and_pad_params(params, (n_channels_total,) + input_hw)
    forward = make_forward_fn(folded, n_action)

    out = jax.block_until_ready(forward(env_state, objective))
    ref = jax.block_until_ready(reference_forward(params, env_state, objective))

    assert out.shape == (batch, n_action), out.shape
    assert jnp.allclose(out, ref, rtol=1e-4, atol=1e-4), (out, ref)
    print("KERNEL_OK")
</pallas_src>

<mosaic_0001>
module attributes {stable_mosaic.version = 11 : i64} {
  func.func @_fused_forward_kernel(%arg0: i32, %arg1: memref<8x1024xf32, #tpu.memory_space<vmem>>, %arg2: memref<1024x512xf32, #tpu.memory_space<vmem>>, %arg3: memref<1x512xf32, #tpu.memory_space<vmem>>, %arg4: memref<512x128xf32, #tpu.memory_space<vmem>>, %arg5: memref<1x128xf32, #tpu.memory_space<vmem>>, %arg6: memref<128x128xf32, #tpu.memory_space<vmem>>, %arg7: memref<1x128xf32, #tpu.memory_space<vmem>>, %arg8: memref<128x128xf32, #tpu.memory_space<vmem>>, %arg9: memref<1x128xf32, #tpu.memory_space<vmem>>, %arg10: memref<8x128xf32, #tpu.memory_space<vmem>>) attributes {dimension_semantics = [#tpu.dimension_semantics<parallel>], iteration_bounds = array<i64: 1>, scalar_prefetch = 0 : i64, scratch_operands = 0 : i64, tpu.core_type = #tpu.core_type<tc>, window_params = [{transform_indices = @transform_0, window_bounds = array<i64: 8, 1024>}, {pipeline_mode = #tpu.pipeline_mode<synchronous>, transform_indices = @transform_1, window_bounds = array<i64: 1024, 512>}, {pipeline_mode = #tpu.pipeline_mode<synchronous>, transform_indices = @transform_2, window_bounds = array<i64: 1, 512>}, {pipeline_mode = #tpu.pipeline_mode<synchronous>, transform_indices = @transform_3, window_bounds = array<i64: 512, 128>}, {pipeline_mode = #tpu.pipeline_mode<synchronous>, transform_indices = @transform_4, window_bounds = array<i64: 1, 128>}, {pipeline_mode = #tpu.pipeline_mode<synchronous>, transform_indices = @transform_5, window_bounds = array<i64: 128, 128>}, {pipeline_mode = #tpu.pipeline_mode<synchronous>, transform_indices = @transform_6, window_bounds = array<i64: 1, 128>}, {pipeline_mode = #tpu.pipeline_mode<synchronous>, transform_indices = @transform_7, window_bounds = array<i64: 128, 128>}, {pipeline_mode = #tpu.pipeline_mode<synchronous>, transform_indices = @transform_8, window_bounds = array<i64: 1, 128>}, {transform_indices = @transform_9, window_bounds = array<i64: 8, 128>}]} {
    %c0 = arith.constant 0 : index
    %c0_0 = arith.constant 0 : index
    %0 = vector.load %arg1[%c0, %c0_0] : memref<8x1024xf32, #tpu.memory_space<vmem>>, vector<8x1024xf32>
    %c0_1 = arith.constant 0 : index
    %c0_2 = arith.constant 0 : index
    %1 = vector.load %arg2[%c0_1, %c0_2] : memref<1024x512xf32, #tpu.memory_space<vmem>>, vector<1024x512xf32>
    %c0_3 = arith.constant 0 : index
    %c0_4 = arith.constant 0 : index
    %2 = vector.load %arg3[%c0_3, %c0_4] : memref<1x512xf32, #tpu.memory_space<vmem>>, vector<1x512xf32>
    %cst = arith.constant dense<0.000000e+00> : vector<8x512xf32>
    %3 = tpu.matmul %0, %1, %cst {dimension_numbers = #tpu.dot_dimension_numbers<[1], [0], [0], [1], [0, 0, 1, 1], [], []>} : vector<8x1024xf32>, vector<1024x512xf32>, vector<8x512xf32> -> vector<8x512xf32>
    %4 = vector.broadcast %2 : vector<1x512xf32> to vector<8x512xf32>
    %5 = arith.addf %3, %4 : vector<8x512xf32>
    %cst_5 = arith.constant 0.000000e+00 : f32
    %6 = vector.broadcast %cst_5 : f32 to vector<8x512xf32>
    %7 = arith.maximumf %5, %6 : vector<8x512xf32>
    %c0_6 = arith.constant 0 : index
    %c0_7 = arith.constant 0 : index
    %8 = vector.load %arg4[%c0_6, %c0_7] : memref<512x128xf32, #tpu.memory_space<vmem>>, vector<512x128xf32>
    %c0_8 = arith.constant 0 : index
    %c0_9 = arith.constant 0 : index
    %9 = vector.load %arg5[%c0_8, %c0_9] : memref<1x128xf32, #tpu.memory_space<vmem>>, vector<1x128xf32>
    %cst_10 = arith.constant dense<0.000000e+00> : vector<8x128xf32>
    %10 = tpu.matmul %7, %8, %cst_10 {dimension_numbers = #tpu.dot_dimension_numbers<[1], [0], [0], [1], [0, 0, 1, 1], [], []>} : vector<8x512xf32>, vector<512x128xf32>, vector<8x128xf32> -> vector<8x128xf32>
    %11 = vector.broadcast %9 : vector<1x128xf32> to vector<8x128xf32>
    %12 = arith.addf %10, %11 : vector<8x128xf32>
    %cst_11 = arith.constant 0.000000e+00 : f32
    %13 = vector.broadcast %cst_11 : f32 to vector<8x128xf32>
    %14 = arith.maximumf %12, %13 : vector<8x128xf32>
    %c0_12 = arith.constant 0 : index
    %c0_13 = arith.constant 0 : index
    %15 = vector.load %arg6[%c0_12, %c0_13] : memref<128x128xf32, #tpu.memory_space<vmem>>, vector<128x128xf32>
    %c0_14 = arith.constant 0 : index
    %c0_15 = arith.constant 0 : index
    %16 = vector.load %arg7[%c0_14, %c0_15] : memref<1x128xf32, #tpu.memory_space<vmem>>, vector<1x128xf32>
    %cst_16 = arith.constant dense<0.000000e+00> : vector<8x128xf32>
    %17 = tpu.matmul %14, %15, %cst_16 {dimension_numbers = #tpu.dot_dimension_numbers<[1], [0], [0], [1], [0, 0, 1, 1], [], []>} : vector<8x128xf32>, vector<128x128xf32>, vector<8x128xf32> -> vector<8x128xf32>
    %18 = vector.broadcast %16 : vector<1x128xf32> to vector<8x128xf32>
    %19 = arith.addf %17, %18 : vector<8x128xf32>
    %cst_17 = arith.constant 0.000000e+00 : f32
    %20 = vector.broadcast %cst_17 : f32 to vector<8x128xf32>
    %21 = arith.maximumf %19, %20 : vector<8x128xf32>
    %c0_18 = arith.constant 0 : index
    %c0_19 = arith.constant 0 : index
    %22 = vector.load %arg8[%c0_18, %c0_19] : memref<128x128xf32, #tpu.memory_space<vmem>>, vector<128x128xf32>
    %c0_20 = arith.constant 0 : index
    %c0_21 = arith.constant 0 : index
    %23 = vector.load %arg9[%c0_20, %c0_21] : memref<1x128xf32, #tpu.memory_space<vmem>>, vector<1x128xf32>
    %cst_22 = arith.constant dense<0.000000e+00> : vector<8x128xf32>
    %24 = tpu.matmul %21, %22, %cst_22 {dimension_numbers = #tpu.dot_dimension_numbers<[1], [0], [0], [1], [0, 0, 1, 1], [], []>} : vector<8x128xf32>, vector<128x128xf32>, vector<8x128xf32> -> vector<8x128xf32>
    %25 = vector.broadcast %23 : vector<1x128xf32> to vector<8x128xf32>
    %26 = arith.addf %24, %25 : vector<8x128xf32>
    %c0_23 = arith.constant 0 : index
    %c0_24 = arith.constant 0 : index
    %27 = vector.load %arg10[%c0_23, %c0_24] : memref<8x128xf32, #tpu.memory_space<vmem>>, vector<8x128xf32>
    tpu.vector_store %arg10[%c0_23, %c0_24], %26 {strides = array<i32>} : memref<8x128xf32, #tpu.memory_space<vmem>>, vector<8x128xf32>,
    return
  }
  func.func @transform_0(%arg0: i32) -> (i32, i32) {
    %c0_i32 = arith.constant 0 : i32
    %c0_i32_0 = arith.constant 0 : i32
    return %arg0, %c0_i32 : i32, i32
  }
  func.func @transform_1(%arg0: i32) -> (i32, i32) {
    %c0_i32 = arith.constant 0 : i32
    %c0_i32_0 = arith.constant 0 : i32
    %c0_i32_1 = arith.constant 0 : i32
    return %c0_i32, %c0_i32_0 : i32, i32
  }
  func.func @transform_2(%arg0: i32) -> (i32, i32) {
    %c0_i32 = arith.constant 0 : i32
    %c0_i32_0 = arith.constant 0 : i32
    %c0_i32_1 = arith.constant 0 : i32
    return %c0_i32, %c0_i32_0 : i32, i32
  }
  func.func @transform_3(%arg0: i32) -> (i32, i32) {
    %c0_i32 = arith.constant 0 : i32
    %c0_i32_0 = arith.constant 0 : i32
    %c0_i32_1 = arith.constant 0 : i32
    return %c0_i32, %c0_i32_0 : i32, i32
  }
  func.func @transform_4(%arg0: i32) -> (i32, i32) {
    %c0_i32 = arith.constant 0 : i32
    %c0_i32_0 = arith.constant 0 : i32
    %c0_i32_1 = arith.constant 0 : i32
    return %c0_i32, %c0_i32_0 : i32, i32
  }
  func.func @transform_5(%arg0: i32) -> (i32, i32) {
    %c0_i32 = arith.constant 0 : i32
    %c0_i32_0 = arith.constant 0 : i32
    %c0_i32_1 = arith.constant 0 : i32
    return %c0_i32, %c0_i32_0 : i32, i32
  }
  func.func @transform_6(%arg0: i32) -> (i32, i32) {
    %c0_i32 = arith.constant 0 : i32
    %c0_i32_0 = arith.constant 0 : i32
    %c0_i32_1 = arith.constant 0 : i32
    return %c0_i32, %c0_i32_0 : i32, i32
  }
  func.func @transform_7(%arg0: i32) -> (i32, i32) {
    %c0_i32 = arith.constant 0 : i32
    %c0_i32_0 = arith.constant 0 : i32
    %c0_i32_1 = arith.constant 0 : i32
    return %c0_i32, %c0_i32_0 : i32, i32
  }
  func.func @transform_8(%arg0: i32) -> (i32, i32) {
    %c0_i32 = arith.constant 0 : i32
    %c0_i32_0 = arith.constant 0 : i32
    %c0_i32_1 = arith.constant 0 : i32
    return %c0_i32, %c0_i32_0 : i32, i32
  }
  func.func @transform_9(%arg0: i32) -> (i32, i32) {
    %c0_i32 = arith.constant 0 : i32
    %c0_i32_0 = arith.constant 0 : i32
    return %arg0, %c0_i32 : i32, i32
  }
}

</mosaic_0001>

<llo_original>
// kernel: forward.1
$region0: #{forward.1}
  #allocation0 [shape = 'u32[]', space=smem, size = 0x4, offset = 0x4, fixed_abs, tag = 'smem constant byte address 0x4 - core index']
  #allocation1 [shape = 'u32[72,128]{1,0:T(1,128)}', space=vmem, size = 0x9000, scoped, tag = 'internal scratch']
  %s0 = inlined_call_operand.vmem [shape: f32[8,1024], index: 0, kind: input, shape index: {}]
  %s1 = inlined_call_operand.hbm [shape: f32[1024,512], index: 1, kind: input, shape index: {}]
  %s2 = inlined_call_operand.hbm [shape: f32[1,512], index: 2, kind: input, shape index: {}]
  %s3 = inlined_call_operand.hbm [shape: f32[512,128], index: 3, kind: input, shape index: {}]
  %s4 = inlined_call_operand.hbm [shape: f32[1,128], index: 4, kind: input, shape index: {}]
  %s5 = inlined_call_operand.hbm [shape: f32[128,128], index: 5, kind: input, shape index: {}]
  %s6 = inlined_call_operand.hbm [shape: f32[1,128], index: 6, kind: input, shape index: {}]
  %s7 = inlined_call_operand.hbm [shape: f32[128,128], index: 7, kind: input, shape index: {}]
  %s8 = inlined_call_operand.hbm [shape: f32[1,128], index: 8, kind: input, shape index: {}]
  %s9 = inlined_call_operand.vmem [shape: f32[8,128], index: 9, kind: output, shape index: {}]
  %s10 = sld [smem:[#allocation0]]
  $region78: #{forward.1} parent=0
    _
  %s12 = ssub.s32 1, %s10
  %s13 = scalar_select 0, %s12, %s10
  $region1: #{forward.1} parent=0
    #allocation2 [shape = 'u8[2097152]{0}', space=vmem, size = 0x200000, scoped, tag = 'input window, operand 1, single buffered']
    #allocation3 [shape = 's32[1]{0}', space=sflag, size = 0x4, scoped, tag = 'scoped memory for forward.1']
    #allocation4 [shape = 'u8[2048]{0}', space=vmem, size = 0x800, scoped, tag = 'input window, operand 2, single buffered']
    #allocation5 [shape = 's32[1]{0}', space=sflag, size = 0x4, scoped, tag = 'scoped memory for forward.1']
    #allocation6 [shape = 'u8[262144]{0}', space=vmem, size = 0x40000, scoped, tag = 'input window, operand 3, single buffered']
    #allocation7 [shape = 'u8[512]{0}', space=vmem, size = 0x400, scoped, tag = 'input window, operand 4, single buffered']
    #allocation8 [shape = 's32[1]{0}', space=sflag, size = 0x4, scoped, tag = 'scoped memory for forward.1']
    #allocation9 [shape = 'u8[65536]{0}', space=vmem, size = 0x10000, scoped, tag = 'input window, operand 5, single buffered']
    #allocation10 [shape = 'u8[512]{0}', space=vmem, size = 0x400, scoped, tag = 'input window, operand 6, single buffered']
    #allocation11 [shape = 's32[1]{0}', space=sflag, size = 0x4, scoped, tag = 'scoped memory for forward.1']
    #allocation12 [shape = 'u8[65536]{0}', space=vmem, size = 0x10000, scoped, tag = 'input window, operand 7, single buffered']
    #allocation13 [shape = 'u8[512]{0}', space=vmem, size = 0x400, scoped, tag = 'input window, operand 8, single buffered']
    #allocation14 [shape = 's32[1]{0}', space=sflag, size = 0x4, scoped, tag = 'scoped memory for forward.1']
    %14 = vsyncpa [#allocation3], 0
    %15 = vsyncpa [#allocation5], 0
    %16 = vsyncpa [#allocation8], 0
    %17 = vsyncpa [#allocation11], 0
    %18 = vsyncpa [#allocation14], 0
    // Predicated region
    $region2: #{forward.1} parent=1 // pred_check
      _
    $region3: #{forward.1} parent=1 // pred_check_branch
      %20 = sbr.rel (0) target = $region5
    $region4: #{forward.1} parent=1 // pred_region
      _
    $region5: #{forward.1} parent=1 // pred_fallthru
      _
    // Predicated region
    $region6: #{forward.1} parent=1 // pred_check
      _
    $region7: #{forward.1} parent=1 // pred_check_branch
      %22 = sbr.rel (0) target = $region9
    $region8: #{forward.1} parent=1 // pred_region
      %24 = vsyncadd [#allocation3], 0
      %s25 = sshll.u32 %s1, 4
      %s26 = int_to_ptr.hbm [resolvable:$true] %s25
      %s27 = sshll.u32 [#allocation2], 4
      %s28 = int_to_ptr.vmem [resolvable:$true] %s27
      %33 = dma.hbm_to_vmem [thread:$0]  %s26, 65536, %s28, [#allocation3], 512, 512, 32
    $region9: #{forward.1} parent=1 // pred_fallthru
      _
    // Predicated region
    $region10: #{forward.1} parent=1 // pred_check
      _
    $region11: #{forward.1} parent=1 // pred_check_branch
      %35 = sbr.rel (0) target = $region13
    $region12: #{forward.1} parent=1 // pred_region
      %37 = vsyncadd [#allocation5], 0
      %s39 = sshll.u32 %s2, 4
      %s40 = int_to_ptr.hbm [resolvable:$true] %s39
      %s41 = sshll.u32 [#allocation4], 4
      %s42 = int_to_ptr.vmem [resolvable:$true] %s41
      %44 = dma.hbm_to_vmem [thread:$0]  %s40, 64, %s42, [#allocation5]
    $region13: #{forward.1} parent=1 // pred_fallthru
      _
    // Predicated region
    $region14: #{forward.1} parent=1 // pred_check
      _
    $region15: #{forward.1} parent=1 // pred_check_branch
      %46 = sbr.rel (0) target = $region17
    $region16: #{forward.1} parent=1 // pred_region
      %48 = vsyncadd [#allocation5], 0
      %s49 = sshll.u32 %s3, 4
      %s50 = int_to_ptr.hbm [resolvable:$true] %s49
      %s51 = sshll.u32 [#allocation6], 4
      %s52 = int_to_ptr.vmem [resolvable:$true] %s51
      %57 = dma.hbm_to_vmem [thread:$0]  %s50, 8192, %s52, [#allocation5], 128, 128, 8
    $region17: #{forward.1} parent=1 // pred_fallthru
      _
    // Predicated region
    $region18: #{forward.1} parent=1 // pred_check
      _
    $region19: #{forward.1} parent=1 // pred_check_branch
      %59 = sbr.rel (0) target = $region21
    $region20: #{forward.1} parent=1 // pred_region
      %61 = vsyncadd [#allocation8], 0
      %s63 = sshll.u32 %s4, 4
      %s64 = int_to_ptr.hbm [resolvable:$true] %s63
      %s65 = sshll.u32 [#allocation7], 4
      %s66 = int_to_ptr.vmem [resolvable:$true] %s65
      %68 = dma.hbm_to_vmem [thread:$0]  %s64, 16, %s66, [#allocation8]
    $region21: #{forward.1} parent=1 // pred_fallthru
      _
    // Predicated region
    $region22: #{forward.1} parent=1 // pred_check
      _
    $region23: #{forward.1} parent=1 // pred_check_branch
      %70 = sbr.rel (0) target = $region25
    $region24: #{forward.1} parent=1 // pred_region
      %72 = vsyncadd [#allocation8], 0
      %s73 = sshll.u32 %s5, 4
      %s74 = int_to_ptr.hbm [resolvable:$true] %s73
      %s75 = sshll.u32 [#allocation9], 4
      %s76 = int_to_ptr.vmem [resolvable:$true] %s75
      %81 = dma.hbm_to_vmem [thread:$0]  %s74, 2048, %s76, [#allocation8], 128, 128, 8
    $region25: #{forward.1} parent=1 // pred_fallthru
      _
    // Predicated region
    $region26: #{forward.1} parent=1 // pred_check
      _
    $region27: #{forward.1} parent=1 // pred_check_branch
      %83 = sbr.rel (0) target = $region29
    $region28: #{forward.1} parent=1 // pred_region
      %85 = vsyncadd [#allocation11], 0
      %s87 = sshll.u32 %s6, 4
      %s88 = int_to_ptr.hbm [resolvable:$true] %s87
      %s89 = sshll.u32 [#allocation10], 4
      %s90 = int_to_ptr.vmem [resolvable:$true] %s89
      %92 = dma.hbm_to_vmem [thread:$0]  %s88, 16, %s90, [#allocation11]
    $region29: #{forward.1} parent=1 // pred_fallthru
      _
    // Predicated region
    $region30: #{forward.1} parent=1 // pred_check
      _
    $region31: #{forward.1} parent=1 // pred_check_branch
      %94 = sbr.rel (0) target = $region33
    $region32: #{forward.1} parent=1 // pred_region
      %96 = vsyncadd [#allocation11], 0
      %s97 = sshll.u32 %s7, 4
      %s98 = int_to_ptr.hbm [resolvable:$true] %s97
      %s99 = sshll.u32 [#allocation12], 4
      %s100 = int_to_ptr.vmem [resolvable:$true] %s99
      %105 = dma.hbm_to_vmem [thread:$0]  %s98, 2048, %s100, [#allocation11], 128, 128, 8
    $region33: #{forward.1} parent=1 // pred_fallthru
      _
    // Predicated region
    $region34: #{forward.1} parent=1 // pred_check
      _
    $region35: #{forward.1} parent=1 // pred_check_branch
      %107 = sbr.rel (0) target = $region37
    $region36: #{forward.1} parent=1 // pred_region
      %109 = vsyncadd [#allocation14], 0
      %s111 = sshll.u32 %s8, 4
      %s112 = int_to_ptr.hbm [resolvable:$true] %s111
      %s113 = sshll.u32 [#allocation13], 4
      %s114 = int_to_ptr.vmem [resolvable:$true] %s113
      %116 = dma.hbm_to_vmem [thread:$0]  %s112, 16, %s114, [#allocation14]
    $region37: #{forward.1} parent=1 // pred_fallthru
      _
    // Predicated region
    $region38: #{forward.1} parent=1 // pred_check
      _
    $region39: #{forward.1} parent=1 // pred_check_branch
      %118 = sbr.rel (0) target = $region41
    $region40: #{forward.1} parent=1 // pred_region
      %120 = dma.done [#allocation3], 65536
    $region41: #{forward.1} parent=1 // pred_fallthru
      _
    // Predicated region
    $region42: #{forward.1} parent=1 // pred_check
      _
    $region43: #{forward.1} parent=1 // pred_check_branch
      %122 = sbr.rel (0) target = $region45
    $region44: #{forward.1} parent=1 // pred_region
      %124 = dma.done [#allocation5], 64
    $region45: #{forward.1} parent=1 // pred_fallthru
      _
    // Predicated region
    $region46: #{forward.1} parent=1 // pred_check
      _
    $region47: #{forward.1} parent=1 // pred_check_branch
      %126 = sbr.rel (0) target = $region49
    $region48: #{forward.1} parent=1 // pred_region
      %128 = dma.done [#allocation5], 8192
    $region49: #{forward.1} parent=1 // pred_fallthru
      _
    // Predicated region
    $region50: #{forward.1} parent=1 // pred_check
      _
    $region51: #{forward.1} parent=1 // pred_check_branch
      %130 = sbr.rel (0) target = $region53
    $region52: #{forward.1} parent=1 // pred_region
      %132 = dma.done [#allocation8], 16
    $region53: #{forward.1} parent=1 // pred_fallthru
      _
    // Predicated region
    $region54: #{forward.1} parent=1 // pred_check
      _
    $region55: #{forward.1} parent=1 // pred_check_branch
      %134 = sbr.rel (0) target = $region57
    $region56: #{forward.1} parent=1 // pred_region
      %136 = dma.done [#allocation8], 2048
    $region57: #{forward.1} parent=1 // pred_fallthru
      _
    // Predicated region
    $region58: #{forward.1} parent=1 // pred_check
      _
    $region59: #{forward.1} parent=1 // pred_check_branch
      %138 = sbr.rel (0) target = $region61
    $region60: #{forward.1} parent=1 // pred_region
      %140 = dma.done [#allocation11], 16
    $region61: #{forward.1} parent=1 // pred_fallthru
      _
    // Predicated region
    $region62: #{forward.1} parent=1 // pred_check
      _
    $region63: #{forward.1} parent=1 // pred_check_branch
      %142 = sbr.rel (0) target = $region65
    $region64: #{forward.1} parent=1 // pred_region
      %144 = dma.done [#allocation11], 2048
    $region65: #{forward.1} parent=1 // pred_fallthru
      _
    // Predicated region
    $region66: #{forward.1} parent=1 // pred_check
      _
    $region67: #{forward.1} parent=1 // pred_check_branch
      %146 = sbr.rel (0) target = $region69
    $region68: #{forward.1} parent=1 // pred_region
      %148 = dma.done [#allocation14], 16
    $region69: #{forward.1} parent=1 // pred_fallthru
      _
    %v149 = vld [vmem:[%s0] sm:$0xff]
    %v150 = vld [vmem:[%s0 + $0x8] sm:$0xff]
    %v151 = vld [vmem:[%s0 + $0x10] sm:$0xff]
    %v152 = vld [vmem:[%s0 + $0x18] sm:$0xff]
    %v153 = vld [vmem:[%s0 + $0x20] sm:$0xff]
    %v154 = vld [vmem:[%s0 + $0x28] sm:$0xff]
    %v155 = vld [vmem:[%s0 + $0x30] sm:$0xff]
    %v156 = vld [vmem:[%s0 + $0x38] sm:$0xff]
    %v157 = vld [vmem:[#allocation2] sm:$0xff]
    %v158 = vld [vmem:[#allocation2 + $0x8] sm:$0xff]
    %v159 = vld [vmem:[#allocation2 + $0x10] sm:$0xff]
    %v160 = vld [vmem:[#allocation2 + $0x18] sm:$0xff]
    %v161 = vld [vmem:[#allocation2 + $0x20] sm:$0xff]
    %v162 = vld [vmem:[#allocation2 + $0x28] sm:$0xff]
    %v163 = vld [vmem:[#allocation2 + $0x30] sm:$0xff]
    %v164 = vld [vmem:[#allocation2 + $0x38] sm:$0xff]
    %v165 = vld [vmem:[#allocation2 + $0x40] sm:$0xff]
    %v166 = vld [vmem:[#allocation2 + $0x48] sm:$0xff]
    %v167 = vld [vmem:[#allocation2 + $0x50] sm:$0xff]
    %v168 = vld [vmem:[#allocation2 + $0x58] sm:$0xff]
    %v169 = vld [vmem:[#allocation2 + $0x60] sm:$0xff]
    %v170 = vld [vmem:[#allocation2 + $0x68] sm:$0xff]
    %v171 = vld [vmem:[#allocation2 + $0x70] sm:$0xff]
    %v172 = vld [vmem:[#allocation2 + $0x78] sm:$0xff]
    %v173 = vld [vmem:[#allocation2 + $0x80] sm:$0xff]
    %v174 = vld [vmem:[#allocation2 + $0x88] sm:$0xff]
    %v175 = vld [vmem:[#allocation2 + $0x90] sm:$0xff]
    %v176 = vld [vmem:[#allocation2 + $0x98] sm:$0xff]
    %v177 = vld [vmem:[#allocation2 + $0xa0] sm:$0xff]
    %v178 = vld [vmem:[#allocation2 + $0xa8] sm:$0xff]
    %v179 = vld [vmem:[#allocation2 + $0xb0] sm:$0xff]
    %v180 = vld [vmem:[#allocation2 + $0xb8] sm:$0xff]
    %v181 = vld [vmem:[#allocation2 + $0xc0] sm:$0xff]
    %v182 = vld [vmem:[#allocation2 + $0xc8] sm:$0xff]
    %v183 = vld [vmem:[#allocation2 + $0xd0] sm:$0xff]
    %v184 = vld [vmem:[#allocation2 + $0xd8] sm:$0xff]
    %v185 = vld [vmem:[#allocation2 + $0xe0] sm:$0xff]
    %v186 = vld [vmem:[#allocation2 + $0xe8] sm:$0xff]
    %v187 = vld [vmem:[#allocation2 + $0xf0] sm:$0xff]
    %v188 = vld [vmem:[#allocation2 + $0xf8] sm:$0xff]
    %v189 = vld [vmem:[#allocation2 + $0x100] sm:$0xff]
    %v190 = vld [vmem:[#allocation2 + $0x108] sm:$0xff]
    %v191 = vld [vmem:[#allocation2 + $0x110] sm:$0xff]
    %v192 = vld [vmem:[#allocation2 + $0x118] sm:$0xff]
    %v193 = vld [vmem:[#allocation2 + $0x120] sm:$0xff]
    %v194 = vld [vmem:[#allocation2 + $0x128] sm:$0xff]
    %v195 = vld [vmem:[#allocation2 + $0x130] sm:$0xff]
    %v196 = vld [vmem:[#allocation2 + $0x138] sm:$0xff]
    %v197 = vld [vmem:[#allocation2 + $0x140] sm:$0xff]
    %v198 = vld [vmem:[#allocation2 + $0x148] sm:$0xff]
    %v199 = vld [vmem:[#allocation2 + $0x150] sm:$0xff]
    %v200 = vld [vmem:[#allocation2 + $0x158] sm:$0xff]
    %v201 = vld [vmem:[#allocation2 + $0x160] sm:$0xff]
    %v202 = vld [vmem:[#allocation2 + $0x168] sm:$0xff]
    %v203 = vld [vmem:[#allocation2 + $0x170] sm:$0xff]
    %v204 = vld [vmem:[#allocation2 + $0x178] sm:$0xff]
    %v205 = vld [vmem:[#allocation2 + $0x180] sm:$0xff]
    %v206 = vld [vmem:[#allocation2 + $0x188] sm:$0xff]
    %v207 = vld [vmem:[#allocation2 + $0x190] sm:$0xff]
    %v208 = vld [vmem:[#allocation2 + $0x198] sm:$0xff]
    %v209 = vld [vmem:[#allocation2 + $0x1a0] sm:$0xff]
    %v210 = vld [vmem:[#allocation2 + $0x1a8] sm:$0xff]
    %v211 = vld [vmem:[#allocation2 + $0x1b0] sm:$0xff]
    %v212 = vld [vmem:[#allocation2 + $0x1b8] sm:$0xff]
    %v213 = vld [vmem:[#allocation2 + $0x1c0] sm:$0xff]
    %v214 = vld [vmem:[#allocation2 + $0x1c8] sm:$0xff]
    %v215 = vld [vmem:[#allocation2 + $0x1d0] sm:$0xff]
    %v216 = vld [vmem:[#allocation2 + $0x1d8] sm:$0xff]
    %v217 = vld [vmem:[#allocation2 + $0x1e0] sm:$0xff]
    %v218 = vld [vmem:[#allocation2 + $0x1e8] sm:$0xff]
    %v219 = vld [vmem:[#allocation2 + $0x1f0] sm:$0xff]
    %v220 = vld [vmem:[#allocation2 + $0x1f8] sm:$0xff]
    %v221 = vld [vmem:[#allocation2 + $0x200] sm:$0xff]
    %v222 = vld [vmem:[#allocation2 + $0x208] sm:$0xff]
    %v223 = vld [vmem:[#allocation2 + $0x210] sm:$0xff]
    %v224 = vld [vmem:[#allocation2 + $0x218] sm:$0xff]
    %v225 = vld [vmem:[#allocation2 + $0x220] sm:$0xff]
    %v226 = vld [vmem:[#allocation2 + $0x228] sm:$0xff]
    %v227 = vld [vmem:[#allocation2 + $0x230] sm:$0xff]
    %v228 = vld [vmem:[#allocation2 + $0x238] sm:$0xff]
    %v229 = vld [vmem:[#allocation2 + $0x240] sm:$0xff]
    %v230 = vld [vmem:[#allocation2 + $0x248] sm:$0xff]
    %v231 = vld [vmem:[#allocation2 + $0x250] sm:$0xff]
    %v232 = vld [vmem:[#allocation2 + $0x258] sm:$0xff]
    %v233 = vld [vmem:[#allocation2 + $0x260] sm:$0xff]
    %v234 = vld [vmem:[#allocation2 + $0x268] sm:$0xff]
    %v235 = vld [vmem:[#allocation2 + $0x270] sm:$0xff]
    %v236 = vld [vmem:[#allocation2 + $0x278] sm:$0xff]
    %v237 = vld [vmem:[#allocation2 + $0x280] sm:$0xff]
    %v238 = vld [vmem:[#allocation2 + $0x288] sm:$0xff]
    %v239 = vld [vmem:[#allocation2 + $0x290] sm:$0xff]
    %v240 = vld [vmem:[#allocation2 + $0x298] sm:$0xff]
    %v241 = vld [vmem:[#allocation2 + $0x2a0] sm:$0xff]
    %v242 = vld [vmem:[#allocation2 + $0x2a8] sm:$0xff]
    %v243 = vld [vmem:[#allocation2 + $0x2b0] sm:$0xff]
    %v244 = vld [vmem:[#allocation2 + $0x2b8] sm:$0xff]
    %v245 = vld [vmem:[#allocation2 + $0x2c0] sm:$0xff]
    %v246 = vld [vmem:[#allocation2 + $0x2c8] sm:$0xff]
    %v247 = vld [vmem:[#allocation2 + $0x2d0] sm:$0xff]
    %v248 = vld [vmem:[#allocation2 + $0x2d8] sm:$0xff]
    %v249 = vld [vmem:[#allocation2 + $0x2e0] sm:$0xff]
    %v250 = vld [vmem:[#allocation2 + $0x2e8] sm:$0xff]
    %v251 = vld [vmem:[#allocation2 + $0x2f0] sm:$0xff]
    %v252 = vld [vmem:[#allocation2 + $0x2f8] sm:$0xff]
    %v253 = vld [vmem:[#allocation2 + $0x300] sm:$0xff]
    %v254 = vld [vmem:[#allocation2 + $0x308] sm:$0xff]
    %v255 = vld [vmem:[#allocation2 + $0x310] sm:$0xff]
    %v256 = vld [vmem:[#allocation2 + $0x318] sm:$0xff]
    %v257 = vld [vmem:[#allocation2 + $0x320] sm:$0xff]
    %v258 = vld [vmem:[#allocation2 + $0x328] sm:$0xff]
    %v259 = vld [vmem:[#allocation2 + $0x330] sm:$0xff]
    %v260 = vld [vmem:[#allocation2 + $0x338] sm:$0xff]
    %v261 = vld [vmem:[#allocation2 + $0x340] sm:$0xff]
    %v262 = vld [vmem:[#allocation2 + $0x348] sm:$0xff]
    %v263 = vld [vmem:[#allocation2 + $0x350] sm:$0xff]
    %v264 = vld [vmem:[#allocation2 + $0x358] sm:$0xff]
    %v265 = vld [vmem:[#allocation2 + $0x360] sm:$0xff]
    %v266 = vld [vmem:[#allocation2 + $0x368] sm:$0xff]
    %v267 = vld [vmem:[#allocation2 + $0x370] sm:$0xff]
    %v268 = vld [vmem:[#allocation2 + $0x378] sm:$0xff]
    %v269 = vld [vmem:[#allocation2 + $0x380] sm:$0xff]
    %v270 = vld [vmem:[#allocation2 + $0x388] sm:$0xff]
    %v271 = vld [vmem:[#allocation2 + $0x390] sm:$0xff]
    %v272 = vld [vmem:[#allocation2 + $0x398] sm:$0xff]
    %v273 = vld [vmem:[#allocation2 + $0x3a0] sm:$0xff]
    %v274 = vld [vmem:[#allocation2 + $0x3a8] sm:$0xff]
    %v275 = vld [vmem:[#allocation2 + $0x3b0] sm:$0xff]
    %v276 = vld [vmem:[#allocation2 + $0x3b8] sm:$0xff]
    %v277 = vld [vmem:[#allocation2 + $0x3c0] sm:$0xff]
    %v278 = vld [vmem:[#allocation2 + $0x3c8] sm:$0xff]
    %v279 = vld [vmem:[#allocation2 + $0x3d0] sm:$0xff]
    %v280 = vld [vmem:[#allocation2 + $0x3d8] sm:$0xff]
    %v281 = vld [vmem:[#allocation2 + $0x3e0] sm:$0xff]
    %v282 = vld [vmem:[#allocation2 + $0x3e8] sm:$0xff]
    %v283 = vld [vmem:[#allocation2 + $0x3f0] sm:$0xff]
    %v284 = vld [vmem:[#allocation2 + $0x3f8] sm:$0xff]
    %v285 = vld [vmem:[#allocation2 + $0x400] sm:$0xff]
    %v286 = vld [vmem:[#allocation2 + $0x408] sm:$0xff]
    %v287 = vld [vmem:[#allocation2 + $0x410] sm:$0xff]
    %v288 = vld [vmem:[#allocation2 + $0x418] sm:$0xff]
    %v289 = vld [vmem:[#allocation2 + $0x420] sm:$0xff]
    %v290 = vld [vmem:[#allocation2 + $0x428] sm:$0xff]
    %v291 = vld [vmem:[#allocation2 + $0x430] sm:$0xff]
    %v292 = vld [vmem:[#allocation2 + $0x438] sm:$0xff]
    %v293 = vld [vmem:[#allocation2 + $0x440] sm:$0xff]
    %v294 = vld [vmem:[#allocation2 + $0x448] sm:$0xff]
    %v295 = vld [vmem:[#allocation2 + $0x450] sm:$0xff]
    %v296 = vld [vmem:[#allocation2 + $0x458] sm:$0xff]
    %v297 = vld [vmem:[#allocation2 + $0x460] sm:$0xff]
    %v298 = vld [vmem:[#allocation2 + $0x468] sm:$0xff]
    %v299 = vld [vmem:[#allocation2 + $0x470] sm:$0xff]
    %v300 = vld [vmem:[#allocation2 + $0x478] sm:$0xff]
    %v301 = vld [vmem:[#allocation2 + $0x480] sm:$0xff]
    %v302 = vld [vmem:[#allocation2 + $0x488] sm:$0xff]
    %v303 = vld [vmem:[#allocation2 + $0x490] sm:$0xff]
    %v304 = vld [vmem:[#allocation2 + $0x498] sm:$0xff]
    %v305 = vld [vmem:[#allocation2 + $0x4a0] sm:$0xff]
    %v306 = vld [vmem:[#allocation2 + $0x4a8] sm:$0xff]
    %v307 = vld [vmem:[#allocation2 + $0x4b0] sm:$0xff]
    %v308 = vld [vmem:[#allocation2 + $0x4b8] sm:$0xff]
    %v309 = vld [vmem:[#allocation2 + $0x4c0] sm:$0xff]
    %v310 = vld [vmem:[#allocation2 + $0x4c8] sm:$0xff]
    %v311 = vld [vmem:[#allocation2 + $0x4d0] sm:$0xff]
    %v312 = vld [vmem:[#allocation2 + $0x4d8] sm:$0xff]
    %v313 = vld [vmem:[#allocation2 + $0x4e0] sm:$0xff]
    %v314 = vld [vmem:[#allocation2 + $0x4e8] sm:$0xff]
    %v315 = vld [vmem:[#allocation2 + $0x4f0] sm:$0xff]
    %v316 = vld [vmem:[#allocation2 + $0x4f8] sm:$0xff]
    %v317 = vld [vmem:[#allocation2 + $0x500] sm:$0xff]
    %v318 = vld [vmem:[#allocation2 + $0x508] sm:$0xff]
    %v319 = vld [vmem:[#allocation2 + $0x510] sm:$0xff]
    %v320 = vld [vmem:[#allocation2 + $0x518] sm:$0xff]
    %v321 = vld [vmem:[#allocation2 + $0x520] sm:$0xff]
    %v322 = vld [vmem:[#allocation2 + $0x528] sm:$0xff]
    %v323 = vld [vmem:[#allocation2 + $0x530] sm:$0xff]
    %v324 = vld [vmem:[#allocation2 + $0x538] sm:$0xff]
    %v325 = vld [vmem:[#allocation2 + $0x540] sm:$0xff]
    %v326 = vld [vmem:[#allocation2 + $0x548] sm:$0xff]
    %v327 = vld [vmem:[#allocation2 + $0x550] sm:$0xff]
    %v328 = vld [vmem:[#allocation2 + $0x558] sm:$0xff]
    %v329 = vld [vmem:[#allocation2 + $0x560] sm:$0xff]
    %v330 = vld [vmem:[#allocation2 + $0x568] sm:$0xff]
    %v331 = vld [vmem:[#allocation2 + $0x570] sm:$0xff]
    %v332 = vld [vmem:[#allocation2 + $0x578] sm:$0xff]
    %v333 = vld [vmem:[#allocation2 + $0x580] sm:$0xff]
    %v334 = vld [vmem:[#allocation2 + $0x588] sm:$0xff]
    %v335 = vld [vmem:[#allocation2 + $0x590] sm:$0xff]
    %v336 = vld [vmem:[#allocation2 + $0x598] sm:$0xff]
    %v337 = vld [vmem:[#allocation2 + $0x5a0] sm:$0xff]
    %v338 = vld [vmem:[#allocation2 + $0x5a8] sm:$0xff]
    %v339 = vld [vmem:[#allocation2 + $0x5b0] sm:$0xff]
    %v340 = vld [vmem:[#allocation2 + $0x5b8] sm:$0xff]
    %v341 = vld [vmem:[#allocation2 + $0x5c0] sm:$0xff]
    %v342 = vld [vmem:[#allocation2 + $0x5c8] sm:$0xff]
    %v343 = vld [vmem:[#allocation2 + $0x5d0] sm:$0xff]
    %v344 = vld [vmem:[#allocation2 + $0x5d8] sm:$0xff]
    %v345 = vld [vmem:[#allocation2 + $0x5e0] sm:$0xff]
    %v346 = vld [vmem:[#allocation2 + $0x5e8] sm:$0xff]
    %v347 = vld [vmem:[#allocation2 + $0x5f0] sm:$0xff]
    %v348 = vld [vmem:[#allocation2 + $0x5f8] sm:$0xff]
    %v349 = vld [vmem:[#allocation2 + $0x600] sm:$0xff]
    %v350 = vld [vmem:[#allocation2 + $0x608] sm:$0xff]
    %v351 = vld [vmem:[#allocation2 + $0x610] sm:$0xff]
    %v352 = vld [vmem:[#allocation2 + $0x618] sm:$0xff]
    %v353 = vld [vmem:[#allocation2 + $0x620] sm:$0xff]
    %v354 = vld [vmem:[#allocation2 + $0x628] sm:$0xff]
    %v355 = vld [vmem:[#allocation2 + $0x630] sm:$0xff]
    %v356 = vld [vmem:[#allocation2 + $0x638] sm:$0xff]
    %v357 = vld [vmem:[#allocation2 + $0x640] sm:$0xff]
    %v358 = vld [vmem:[#allocation2 + $0x648] sm:$0xff]
    %v359 = vld [vmem:[#allocation2 + $0x650] sm:$0xff]
    %v360 = vld [vmem:[#allocation2 + $0x658] sm:$0xff]
    %v361 = vld [vmem:[#allocation2 + $0x660] sm:$0xff]
    %v362 = vld [vmem:[#allocation2 + $0x668] sm:$0xff]
    %v363 = vld [vmem:[#allocation2 + $0x670] sm:$0xff]
    %v364 = vld [vmem:[#allocation2 + $0x678] sm:$0xff]
    %v365 = vld [vmem:[#allocation2 + $0x680] sm:$0xff]
    %v366 = vld [vmem:[#allocation2 + $0x688] sm:$0xff]
    %v367 = vld [vmem:[#allocation2 + $0x690] sm:$0xff]
    %v368 = vld [vmem:[#allocation2 + $0x698] sm:$0xff]
    %v369 = vld [vmem:[#allocation2 + $0x6a0] sm:$0xff]
    %v370 = vld [vmem:[#allocation2 + $0x6a8] sm:$0xff]
    %v371 = vld [vmem:[#allocation2 + $0x6b0] sm:$0xff]
    %v372 = vld [vmem:[#allocation2 + $0x6b8] sm:$0xff]
    %v373 = vld [vmem:[#allocation2 + $0x6c0] sm:$0xff]
    %v374 = vld [vmem:[#allocation2 + $0x6c8] sm:$0xff]
    %v375 = vld [vmem:[#allocation2 + $0x6d0] sm:$0xff]
    %v376 = vld [vmem:[#allocation2 + $0x6d8] sm:$0xff]
    %v377 = vld [vmem:[#allocation2 + $0x6e0] sm:$0xff]
    %v378 = vld [vmem:[#allocation2 + $0x6e8] sm:$0xff]
    %v379 = vld [vmem:[#allocation2 + $0x6f0] sm:$0xff]
    %v380 = vld [vmem:[#allocation2 + $0x6f8] sm:$0xff]
    %v381 = vld [vmem:[#allocation2 + $0x700] sm:$0xff]
    %v382 = vld [vmem:[#allocation2 + $0x708] sm:$0xff]
    %v383 = vld [vmem:[#allocation2 + $0x710] sm:$0xff]
    %v384 = vld [vmem:[#allocation2 + $0x718] sm:$0xff]
    %v385 = vld [vmem:[#allocation2 + $0x720] sm:$0xff]
    %v386 = vld [vmem:[#allocation2 + $0x728] sm:$0xff]
    %v387 = vld [vmem:[#allocation2 + $0x730] sm:$0xff]
    %v388 = vld [vmem:[#allocation2 + $0x738] sm:$0xff]
    %v389 = vld [vmem:[#allocation2 + $0x740] sm:$0xff]
    %v390 = vld [vmem:[#allocation2 + $0x748] sm:$0xff]
    %v391 = vld [vmem:[#allocation2 + $0x750] sm:$0xff]
    %v392 = vld [vmem:[#allocation2 + $0x758] sm:$0xff]
    %v393 = vld [vmem:[#allocation2 + $0x760] sm:$0xff]
    %v394 = vld [vmem:[#allocation2 + $0x768] sm:$0xff]
    %v395 = vld [vmem:[#allocation2 + $0x770] sm:$0xff]
    %v396 = vld [vmem:[#allocation2 + $0x778] sm:$0xff]
    %v397 = vld [vmem:[#allocation2 + $0x780] sm:$0xff]
    %v398 = vld [vmem:[#allocation2 + $0x788] sm:$0xff]
    %v399 = vld [vmem:[#allocation2 + $0x790] sm:$0xff]
    %v400 = vld [vmem:[#allocation2 + $0x798] sm:$0xff]
    %v401 = vld [vmem:[#allocation2 + $0x7a0] sm:$0xff]
    %v402 = vld [vmem:[#allocation2 + $0x7a8] sm:$0xff]
    %v403 = vld [vmem:[#allocation2 + $0x7b0] sm:$0xff]
    %v404 = vld [vmem:[#allocation2 + $0x7b8] sm:$0xff]
    %v405 = vld [vmem:[#allocation2 + $0x7c0] sm:$0xff]
    %v406 = vld [vmem:[#allocation2 + $0x7c8] sm:$0xff]
    %v407 = vld [vmem:[#allocation2 + $0x7d0] sm:$0xff]
    %v408 = vld [vmem:[#allocation2 + $0x7d8] sm:$0xff]
    %v409 = vld [vmem:[#allocation2 + $0x7e0] sm:$0xff]
    %v410 = vld [vmem:[#allocation2 + $0x7e8] sm:$0xff]
    %v411 = vld [vmem:[#allocation2 + $0x7f0] sm:$0xff]
    %v412 = vld [vmem:[#allocation2 + $0x7f8] sm:$0xff]
    %v413 = vld [vmem:[#allocation2 + $0x800] sm:$0xff]
    %v414 = vld [vmem:[#allocation2 + $0x808] sm:$0xff]
    %v415 = vld [vmem:[#allocation2 + $0x810] sm:$0xff]
    %v416 = vld [vmem:[#allocation2 + $0x818] sm:$0xff]
    %v417 = vld [vmem:[#allocation2 + $0x820] sm:$0xff]
    %v418 = vld [vmem:[#allocation2 + $0x828] sm:$0xff]
    %v419 = vld [vmem:[#allocation2 + $0x830] sm:$0xff]
    %v420 = vld [vmem:[#allocation2 + $0x838] sm:$0xff]
    %v421 = vld [vmem:[#allocation2 + $0x840] sm:$0xff]
    %v422 = vld [vmem:[#allocation2 + $0x848] sm:$0xff]
    %v423 = vld [vmem:[#allocation2 + $0x850] sm:$0xff]
    %v424 = vld [vmem:[#allocation2 + $0x858] sm:$0xff]
    %v425 = vld [vmem:[#allocation2 + $0x860] sm:$0xff]
    %v426 = vld [vmem:[#allocation2 + $0x868] sm:$0xff]
    %v427 = vld [vmem:[#allocation2 + $0x870] sm:$0xff]
    %v428 = vld [vmem:[#allocation2 + $0x878] sm:$0xff]
    %v429 = vld [vmem:[#allocation2 + $0x880] sm:$0xff]
    %v430 = vld [vmem:[#allocation2 + $0x888] sm:$0xff]
    %v431 = vld [vmem:[#allocation2 + $0x890] sm:$0xff]
    %v432 = vld [vmem:[#allocation2 + $0x898] sm:$0xff]
    %v433 = vld [vmem:[#allocation2 + $0x8a0] sm:$0xff]
    %v434 = vld [vmem:[#allocation2 + $0x8a8] sm:$0xff]
    %v435 = vld [vmem:[#allocation2 + $0x8b0] sm:$0xff]
    %v436 = vld [vmem:[#allocation2 + $0x8b8] sm:$0xff]
    %v437 = vld [vmem:[#allocation2 + $0x8c0] sm:$0xff]
    %v438 = vld [vmem:[#allocation2 + $0x8c8] sm:$0xff]
    %v439 = vld [vmem:[#allocation2 + $0x8d0] sm:$0xff]
    %v440 = vld [vmem:[#allocation2 + $0x8d8] sm:$0xff]
    %v441 = vld [vmem:[#allocation2 + $0x8e0] sm:$0xff]
    %v442 = vld [vmem:[#allocation2 + $0x8e8] sm:$0xff]
    %v443 = vld [vmem:[#allocation2 + $0x8f0] sm:$0xff]
    %v444 = vld [vmem:[#allocation2 + $0x8f8] sm:$0xff]
    %v445 = vld [vmem:[#allocation2 + $0x900] sm:$0xff]
    %v446 = vld [vmem:[#allocation2 + $0x908] sm:$0xff]
    %v447 = vld [vmem:[#allocation2 + $0x910] sm:$0xff]
    %v448 = vld [vmem:[#allocation2 + $0x918] sm:$0xff]
    %v449 = vld [vmem:[#allocation2 + $0x920] sm:$0xff]
    %v450 = vld [vmem:[#allocation2 + $0x928] sm:$0xff]
    %v451 = vld [vmem:[#allocation2 + $0x930] sm:$0xff]
    %v452 = vld [vmem:[#allocation2 + $0x938] sm:$0xff]
    %v453 = vld [vmem:[#allocation2 + $0x940] sm:$0xff]
    %v454 = vld [vmem:[#allocation2 + $0x948] sm:$0xff]
    %v455 = vld [vmem:[#allocation2 + $0x950] sm:$0xff]
    %v456 = vld [vmem:[#allocation2 + $0x958] sm:$0xff]
    %v457 = vld [vmem:[#allocation2 + $0x960] sm:$0xff]
    %v458 = vld [vmem:[#allocation2 + $0x968] sm:$0xff]
    %v459 = vld [vmem:[#allocation2 + $0x970] sm:$0xff]
    %v460 = vld [vmem:[#allocation2 + $0x978] sm:$0xff]
    %v461 = vld [vmem:[#allocation2 + $0x980] sm:$0xff]
    %v462 = vld [vmem:[#allocation2 + $0x988] sm:$0xff]
    %v463 = vld [vmem:[#allocation2 + $0x990] sm:$0xff]
    %v464 = vld [vmem:[#allocation2 + $0x998] sm:$0xff]
    %v465 = vld [vmem:[#allocation2 + $0x9a0] sm:$0xff]
    %v466 = vld [vmem:[#allocation2 + $0x9a8] sm:$0xff]
    %v467 = vld [vmem:[#allocation2 + $0x9b0] sm:$0xff]
    %v468 = vld [vmem:[#allocation2 + $0x9b8] sm:$0xff]
    %v469 = vld [vmem:[#allocation2 + $0x9c0] sm:$0xff]
    %v470 = vld [vmem:[#allocation2 + $0x9c8] sm:$0xff]
    %v471 = vld [vmem:[#allocation2 + $0x9d0] sm:$0xff]
    %v472 = vld [vmem:[#allocation2 + $0x9d8] sm:$0xff]
    %v473 = vld [vmem:[#allocation2 + $0x9e0] sm:$0xff]
    %v474 = vld [vmem:[#allocation2 + $0x9e8] sm:$0xff]
    %v475 = vld [vmem:[#allocation2 + $0x9f0] sm:$0xff]
    %v476 = vld [vmem:[#allocation2 + $0x9f8] sm:$0xff]
    %v477 = vld [vmem:[#allocation2 + $0xa00] sm:$0xff]
    %v478 = vld [vmem:[#allocation2 + $0xa08] sm:$0xff]
    %v479 = vld [vmem:[#allocation2 + $0xa10] sm:$0xff]
    %v480 = vld [vmem:[#allocation2 + $0xa18] sm:$0xff]
    %v481 = vld [vmem:[#allocation2 + $0xa20] sm:$0xff]
    %v482 = vld [vmem:[#allocation2 + $0xa28] sm:$0xff]
    %v483 = vld [vmem:[#allocation2 + $0xa30] sm:$0xff]
    %v484 = vld [vmem:[#allocation2 + $0xa38] sm:$0xff]
    %v485 = vld [vmem:[#allocation2 + $0xa40] sm:$0xff]
    %v486 = vld [vmem:[#allocation2 + $0xa48] sm:$0xff]
    %v487 = vld [vmem:[#allocation2 + $0xa50] sm:$0xff]
    %v488 = vld [vmem:[#allocation2 + $0xa58] sm:$0xff]
    %v489 = vld [vmem:[#allocation2 + $0xa60] sm:$0xff]
    %v490 = vld [vmem:[#allocation2 + $0xa68] sm:$0xff]
    %v491 = vld [vmem:[#allocation2 + $0xa70] sm:$0xff]
    %v492 = vld [vmem:[#allocation2 + $0xa78] sm:$0xff]
    %v493 = vld [vmem:[#allocation2 + $0xa80] sm:$0xff]
    %v494 = vld [vmem:[#allocation2 + $0xa88] sm:$0xff]
    %v495 = vld [vmem:[#allocation2 + $0xa90] sm:$0xff]
    %v496 = vld [vmem:[#allocation2 + $0xa98] sm:$0xff]
    %v497 = vld [vmem:[#allocation2 + $0xaa0] sm:$0xff]
    %v498 = vld [vmem:[#allocation2 + $0xaa8] sm:$0xff]
    %v499 = vld [vmem:[#allocation2 + $0xab0] sm:$0xff]
    %v500 = vld [vmem:[#allocation2 + $0xab8] sm:$0xff]
    %v501 = vld [vmem:[#allocation2 + $0xac0] sm:$0xff]
    %v502 = vld [vmem:[#allocation2 + $0xac8] sm:$0xff]
    %v503 = vld [vmem:[#allocation2 + $0xad0] sm:$0xff]
    %v504 = vld [vmem:[#allocation2 + $0xad8] sm:$0xff]
    %v505 = vld [vmem:[#allocation2 + $0xae0] sm:$0xff]
    %v506 = vld [vmem:[#allocation2 + $0xae8] sm:$0xff]
    %v507 = vld [vmem:[#allocation2 + $0xaf0] sm:$0xff]
    %v508 = vld [vmem:[#allocation2 + $0xaf8] sm:$0xff]
    %v509 = vld [vmem:[#allocation2 + $0xb00] sm:$0xff]
    %v510 = vld [vmem:[#allocation2 + $0xb08] sm:$0xff]
    %v511 = vld [vmem:[#allocation2 + $0xb10] sm:$0xff]
    %v512 = vld [vmem:[#allocation2 + $0xb18] sm:$0xff]
    %v513 = vld [vmem:[#allocation2 + $0xb20] sm:$0xff]
    %v514 = vld [vmem:[#allocation2 + $0xb28] sm:$0xff]
    %v515 = vld [vmem:[#allocation2 + $0xb30] sm:$0xff]
    %v516 = vld [vmem:[#allocation2 + $0xb38] sm:$0xff]
    %v517 = vld [vmem:[#allocation2 + $0xb40] sm:$0xff]
    %v518 = vld [vmem:[#allocation2 + $0xb48] sm:$0xff]
    %v519 = vld [vmem:[#allocation2 + $0xb50] sm:$0xff]
    %v520 = vld [vmem:[#allocation2 + $0xb58] sm:$0xff]
    %v521 = vld [vmem:[#allocation2 + $0xb60] sm:$0xff]
    %v522 = vld [vmem:[#allocation2 + $0xb68] sm:$0xff]
    %v523 = vld [vmem:[#allocation2 + $0xb70] sm:$0xff]
    %v524 = vld [vmem:[#allocation2 + $0xb78] sm:$0xff]
    %v525 = vld [vmem:[#allocation2 + $0xb80] sm:$0xff]
    %v526 = vld [vmem:[#allocation2 + $0xb88] sm:$0xff]
    %v527 = vld [vmem:[#allocation2 + $0xb90] sm:$0xff]
    %v528 = vld [vmem:[#allocation2 + $0xb98] sm:$0xff]
    %v529 = vld [vmem:[#allocation2 + $0xba0] sm:$0xff]
    %v530 = vld [vmem:[#allocation2 + $0xba8] sm:$0xff]
    %v531 = vld [vmem:[#allocation2 + $0xbb0] sm:$0xff]
    %v532 = vld [vmem:[#allocation2 + $0xbb8] sm:$0xff]
    %v533 = vld [vmem:[#allocation2 + $0xbc0] sm:$0xff]
    %v534 = vld [vmem:[#allocation2 + $0xbc8] sm:$0xff]
    %v535 = vld [vmem:[#allocation2 + $0xbd0] sm:$0xff]
    %v536 = vld [vmem:[#allocation2 + $0xbd8] sm:$0xff]
    %v537 = vld [vmem:[#allocation2 + $0xbe0] sm:$0xff]
    %v538 = vld [vmem:[#allocation2 + $0xbe8] sm:$0xff]
    %v539 = vld [vmem:[#allocation2 + $0xbf0] sm:$0xff]
    %v540 = vld [vmem:[#allocation2 + $0xbf8] sm:$0xff]
    %v541 = vld [vmem:[#allocation2 + $0xc00] sm:$0xff]
    %v542 = vld [vmem:[#allocation2 + $0xc08] sm:$0xff]
    %v543 = vld [vmem:[#allocation2 + $0xc10] sm:$0xff]
    %v544 = vld [vmem:[#allocation2 + $0xc18] sm:$0xff]
    %v545 = vld [vmem:[#allocation2 + $0xc20] sm:$0xff]
    %v546 = vld [vmem:[#allocation2 + $0xc28] sm:$0xff]
    %v547 = vld [vmem:[#allocation2 + $0xc30] sm:$0xff]
    %v548 = vld [vmem:[#allocation2 + $0xc38] sm:$0xff]
    %v549 = vld [vmem:[#allocation2 + $0xc40] sm:$0xff]
    %v550 = vld [vmem:[#allocation2 + $0xc48] sm:$0xff]
    %v551 = vld [vmem:[#allocation2 + $0xc50] sm:$0xff]
    %v552 = vld [vmem:[#allocation2 + $0xc58] sm:$0xff]
    %v553 = vld [vmem:[#allocation2 + $0xc60] sm:$0xff]
    %v554 = vld [vmem:[#allocation2 + $0xc68] sm:$0xff]
    %v555 = vld [vmem:[#allocation2 + $0xc70] sm:$0xff]
    %v556 = vld [vmem:[#allocation2 + $0xc78] sm:$0xff]
    %v557 = vld [vmem:[#allocation2 + $0xc80] sm:$0xff]
    %v558 = vld [vmem:[#allocation2 + $0xc88] sm:$0xff]
    %v559 = vld [vmem:[#allocation2 + $0xc90] sm:$0xff]
    %v560 = vld [vmem:[#allocation2 + $0xc98] sm:$0xff]
    %v561 = vld [vmem:[#allocation2 + $0xca0] sm:$0xff]
    %v562 = vld [vmem:[#allocation2 + $0xca8] sm:$0xff]
    %v563 = vld [vmem:[#allocation2 + $0xcb0] sm:$0xff]
    %v564 = vld [vmem:[#allocation2 + $0xcb8] sm:$0xff]
    %v565 = vld [vmem:[#allocation2 + $0xcc0] sm:$0xff]
    %v566 = vld [vmem:[#allocation2 + $0xcc8] sm:$0xff]
    %v567 = vld [vmem:[#allocation2 + $0xcd0] sm:$0xff]
    %v568 = vld [vmem:[#allocation2 + $0xcd8] sm:$0xff]
    %v569 = vld [vmem:[#allocation2 + $0xce0] sm:$0xff]
    %v570 = vld [vmem:[#allocation2 + $0xce8] sm:$0xff]
    %v571 = vld [vmem:[#allocation2 + $0xcf0] sm:$0xff]
    %v572 = vld [vmem:[#allocation2 + $0xcf8] sm:$0xff]
    %v573 = vld [vmem:[#allocation2 + $0xd00] sm:$0xff]
    %v574 = vld [vmem:[#allocation2 + $0xd08] sm:$0xff]
    %v575 = vld [vmem:[#allocation2 + $0xd10] sm:$0xff]
    %v576 = vld [vmem:[#allocation2 + $0xd18] sm:$0xff]
    %v577 = vld [vmem:[#allocation2 + $0xd20] sm:$0xff]
    %v578 = vld [vmem:[#allocation2 + $0xd28] sm:$0xff]
    %v579 = vld [vmem:[#allocation2 + $0xd30] sm:$0xff]
    %v580 = vld [vmem:[#allocation2 + $0xd38] sm:$0xff]
    %v581 = vld [vmem:[#allocation2 + $0xd40] sm:$0xff]
    %v582 = vld [vmem:[#allocation2 + $0xd48] sm:$0xff]
    %v583 = vld [vmem:[#allocation2 + $0xd50] sm:$0xff]
    %v584 = vld [vmem:[#allocation2 + $0xd58] sm:$0xff]
    %v585 = vld [vmem:[#allocation2 + $0xd60] sm:$0xff]
    %v586 = vld [vmem:[#allocation2 + $0xd68] sm:$0xff]
    %v587 = vld [vmem:[#allocation2 + $0xd70] sm:$0xff]
    %v588 = vld [vmem:[#allocation2 + $0xd78] sm:$0xff]
    %v589 = vld [vmem:[#allocation2 + $0xd80] sm:$0xff]
    %v590 = vld [vmem:[#allocation2 + $0xd88] sm:$0xff]
    %v591 = vld [vmem:[#allocation2 + $0xd90] sm:$0xff]
    %v592 = vld [vmem:[#allocation2 + $0xd98] sm:$0xff]
    %v593 = vld [vmem:[#allocation2 + $0xda0] sm:$0xff]
    %v594 = vld [vmem:[#allocation2 + $0xda8] sm:$0xff]
    %v595 = vld [vmem:[#allocation2 + $0xdb0] sm:$0xff]
    %v596 = vld [vmem:[#allocation2 + $0xdb8] sm:$0xff]
    %v597 = vld [vmem:[#allocation2 + $0xdc0] sm:$0xff]
    %v598 = vld [vmem:[#allocation2 + $0xdc8] sm:$0xff]
    %v599 = vld [vmem:[#allocation2 + $0xdd0] sm:$0xff]
    %v600 = vld [vmem:[#allocation2 + $0xdd8] sm:$0xff]
    %v601 = vld [vmem:[#allocation2 + $0xde0] sm:$0xff]
    %v602 = vld [vmem:[#allocation2 + $0xde8] sm:$0xff]
    %v603 = vld [vmem:[#allocation2 + $0xdf0] sm:$0xff]
    %v604 = vld [vmem:[#allocation2 + $0xdf8] sm:$0xff]
    %v605 = vld [vmem:[#allocation2 + $0xe00] sm:$0xff]
    %v606 = vld [vmem:[#allocation2 + $0xe08] sm:$0xff]
    %v607 = vld [vmem:[#allocation2 + $0xe10] sm:$0xff]
    %v608 = vld [vmem:[#allocation2 + $0xe18] sm:$0xff]
    %v609 = vld [vmem:[#allocation2 + $0xe20] sm:$0xff]
    %v610 = vld [vmem:[#allocation2 + $0xe28] sm:$0xff]
    %v611 = vld [vmem:[#allocation2 + $0xe30] sm:$0xff]
    %v612 = vld [vmem:[#allocation2 + $0xe38] sm:$0xff]
    %v613 = vld [vmem:[#allocation2 + $0xe40] sm:$0xff]
    %v614 = vld [vmem:[#allocation2 + $0xe48] sm:$0xff]
    %v615 = vld [vmem:[#allocation2 + $0xe50] sm:$0xff]
    %v616 = vld [vmem:[#allocation2 + $0xe58] sm:$0xff]
    %v617 = vld [vmem:[#allocation2 + $0xe60] sm:$0xff]
    %v618 = vld [vmem:[#allocation2 + $0xe68] sm:$0xff]
    %v619 = vld [vmem:[#allocation2 + $0xe70] sm:$0xff]
    %v620 = vld [vmem:[#allocation2 + $0xe78] sm:$0xff]
    %v621 = vld [vmem:[#allocation2 + $0xe80] sm:$0xff]
    %v622 = vld [vmem:[#allocation2 + $0xe88] sm:$0xff]
    %v623 = vld [vmem:[#allocation2 + $0xe90] sm:$0xff]
    %v624 = vld [vmem:[#allocation2 + $0xe98] sm:$0xff]
    %v625 = vld [vmem:[#allocation2 + $0xea0] sm:$0xff]
    %v626 = vld [vmem:[#allocation2 + $0xea8] sm:$0xff]
    %v627 = vld [vmem:[#allocation2 + $0xeb0] sm:$0xff]
    %v628 = vld [vmem:[#allocation2 + $0xeb8] sm:$0xff]
    %v629 = vld [vmem:[#allocation2 + $0xec0] sm:$0xff]
    %v630 = vld [vmem:[#allocation2 + $0xec8] sm:$0xff]
    %v631 = vld [vmem:[#allocation2 + $0xed0] sm:$0xff]
    %v632 = vld [vmem:[#allocation2 + $0xed8] sm:$0xff]
    %v633 = vld [vmem:[#allocation2 + $0xee0] sm:$0xff]
    %v634 = vld [vmem:[#allocation2 + $0xee8] sm:$0xff]
    %v635 = vld [vmem:[#allocation2 + $0xef0] sm:$0xff]
    %v636 = vld [vmem:[#allocation2 + $0xef8] sm:$0xff]
    %v637 = vld [vmem:[#allocation2 + $0xf00] sm:$0xff]
    %v638 = vld [vmem:[#allocation2 + $0xf08] sm:$0xff]
    %v639 = vld [vmem:[#allocation2 + $0xf10] sm:$0xff]
    %v640 = vld [vmem:[#allocation2 + $0xf18] sm:$0xff]
    %v641 = vld [vmem:[#allocation2 + $0xf20] sm:$0xff]
    %v642 = vld [vmem:[#allocation2 + $0xf28] sm:$0xff]
    %v643 = vld [vmem:[#allocation2 + $0xf30] sm:$0xff]
    %v644 = vld [vmem:[#allocation2 + $0xf38] sm:$0xff]
    %v645 = vld [vmem:[#allocation2 + $0xf40] sm:$0xff]
    %v646 = vld [vmem:[#allocation2 + $0xf48] sm:$0xff]
    %v647 = vld [vmem:[#allocation2 + $0xf50] sm:$0xff]
    %v648 = vld [vmem:[#allocation2 + $0xf58] sm:$0xff]
    %v649 = vld [vmem:[#allocation2 + $0xf60] sm:$0xff]
    %v650 = vld [vmem:[#allocation2 + $0xf68] sm:$0xff]
    %v651 = vld [vmem:[#allocation2 + $0xf70] sm:$0xff]
    %v652 = vld [vmem:[#allocation2 + $0xf78] sm:$0xff]
    %v653 = vld [vmem:[#allocation2 + $0xf80] sm:$0xff]
    %v654 = vld [vmem:[#allocation2 + $0xf88] sm:$0xff]
    %v655 = vld [vmem:[#allocation2 + $0xf90] sm:$0xff]
    %v656 = vld [vmem:[#allocation2 + $0xf98] sm:$0xff]
    %v657 = vld [vmem:[#allocation2 + $0xfa0] sm:$0xff]
    %v658 = vld [vmem:[#allocation2 + $0xfa8] sm:$0xff]
    %v659 = vld [vmem:[#allocation2 + $0xfb0] sm:$0xff]
    %v660 = vld [vmem:[#allocation2 + $0xfb8] sm:$0xff]
    %v661 = vld [vmem:[#allocation2 + $0xfc0] sm:$0xff]
    %v662 = vld [vmem:[#allocation2 + $0xfc8] sm:$0xff]
    %v663 = vld [vmem:[#allocation2 + $0xfd0] sm:$0xff]
    %v664 = vld [vmem:[#allocation2 + $0xfd8] sm:$0xff]
    %v665 = vld [vmem:[#allocation2 + $0xfe0] sm:$0xff]
    %v666 = vld [vmem:[#allocation2 + $0xfe8] sm:$0xff]
    %v667 = vld [vmem:[#allocation2 + $0xff0] sm:$0xff]
    %v668 = vld [vmem:[#allocation2 + $0xff8] sm:$0xff]
    %v669 = vld [vmem:[#allocation4] sm:$0xf]
    %v671 = vperm.slane %v669, 0
    %v672 = vperm.slane %v669, 1
    %v673 = vperm.slane %v669, 2
    %v674 = vperm.slane %v669, 3
    %679 = vmatpush.msra.mxu0 %v217
    %680 = vmatpush.msra.mxu0 %v213
    %681 = vmatpush.msra.mxu0 %v209
    %682 = vmatpush.msra.mxu0 %v205
    %683 = vmatpush.msra.mxu0 %v201
    %684 = vmatpush.msra.mxu0 %v197
    %685 = vmatpush.msra.mxu0 %v193
    %686 = vmatpush.msra.mxu0 %v189
    %687 = vmatpush.msra.mxu0 %v185
    %688 = vmatpush.msra.mxu0 %v181
    %689 = vmatpush.msra.mxu0 %v177
    %690 = vmatpush.msra.mxu0 %v173
    %691 = vmatpush.msra.mxu0 %v169
    %692 = vmatpush.msra.mxu0 %v165
    %693 = vmatpush.msra.mxu0 %v161
    %694 = vmatpush.msra.mxu0 %v157
    %695 = vmatmul.f32.gmra.mxu0 %v149
    %v696 = vpop.f32.mrf.mxu0
    %v697 = vadd.f32 %v671, %v696
    %698 = vdwg.mxu0
    %699 = vmatpush.msra.mxu0 %v281
    %700 = vmatpush.msra.mxu0 %v277
    %701 = vmatpush.msra.mxu0 %v273
    %702 = vmatpush.msra.mxu0 %v269
    %703 = vmatpush.msra.mxu0 %v265
    %704 = vmatpush.msra.mxu0 %v261
    %705 = vmatpush.msra.mxu0 %v257
    %706 = vmatpush.msra.mxu0 %v253
    %707 = vmatpush.msra.mxu0 %v249
    %708 = vmatpush.msra.mxu0 %v245
    %709 = vmatpush.msra.mxu0 %v241
    %710 = vmatpush.msra.mxu0 %v237
    %711 = vmatpush.msra.mxu0 %v233
    %712 = vmatpush.msra.mxu0 %v229
    %713 = vmatpush.msra.mxu0 %v225
    %714 = vmatpush.msra.mxu0 %v221
    %715 = vmatmul.f32.gmra.mxu0 %v150
    %v716 = vpop.f32.mrf.mxu0
    %v717 = vadd.f32 %v697, %v716
    %718 = vdwg.mxu0
    %719 = vmatpush.msra.mxu0 %v345
    %720 = vmatpush.msra.mxu0 %v341
    %721 = vmatpush.msra.mxu0 %v337
    %722 = vmatpush.msra.mxu0 %v333
    %723 = vmatpush.msra.mxu0 %v329
    %724 = vmatpush.msra.mxu0 %v325
    %725 = vmatpush.msra.mxu0 %v321
    %726 = vmatpush.msra.mxu0 %v317
    %727 = vmatpush.msra.mxu0 %v313
    %728 = vmatpush.msra.mxu0 %v309
    %729 = vmatpush.msra.mxu0 %v305
    %730 = vmatpush.msra.mxu0 %v301
    %731 = vmatpush.msra.mxu0 %v297
    %732 = vmatpush.msra.mxu0 %v293
    %733 = vmatpush.msra.mxu0 %v289
    %734 = vmatpush.msra.mxu0 %v285
    %735 = vmatmul.f32.gmra.mxu0 %v151
    %v736 = vpop.f32.mrf.mxu0
    %v737 = vadd.f32 %v717, %v736
    %738 = vdwg.mxu0
    %739 = vmatpush.msra.mxu0 %v409
    %740 = vmatpush.msra.mxu0 %v405
    %741 = vmatpush.msra.mxu0 %v401
    %742 = vmatpush.msra.mxu0 %v397
    %743 = vmatpush.msra.mxu0 %v393
    %744 = vmatpush.msra.mxu0 %v389
    %745 = vmatpush.msra.mxu0 %v385
    %746 = vmatpush.msra.mxu0 %v381
    %747 = vmatpush.msra.mxu0 %v377
    %748 = vmatpush.msra.mxu0 %v373
    %749 = vmatpush.msra.mxu0 %v369
    %750 = vmatpush.msra.mxu0 %v365
    %751 = vmatpush.msra.mxu0 %v361
    %752 = vmatpush.msra.mxu0 %v357
    %753 = vmatpush.msra.mxu0 %v353
    %754 = vmatpush.msra.mxu0 %v349
    %755 = vmatmul.f32.gmra.mxu0 %v152
    %v756 = vpop.f32.mrf.mxu0
    %v757 = vadd.f32 %v737, %v756
    %758 = vdwg.mxu0
    %759 = vmatpush.msra.mxu0 %v473
    %760 = vmatpush.msra.mxu0 %v469
    %761 = vmatpush.msra.mxu0 %v465
    %762 = vmatpush.msra.mxu0 %v461
    %763 = vmatpush.msra.mxu0 %v457
    %764 = vmatpush.msra.mxu0 %v453
    %765 = vmatpush.msra.mxu0 %v449
    %766 = vmatpush.msra.mxu0 %v445
    %767 = vmatpush.msra.mxu0 %v441
    %768 = vmatpush.msra.mxu0 %v437
    %769 = vmatpush.msra.mxu0 %v433
    %770 = vmatpush.msra.mxu0 %v429
    %771 = vmatpush.msra.mxu0 %v425
    %772 = vmatpush.msra.mxu0 %v421
    %773 = vmatpush.msra.mxu0 %v417
    %774 = vmatpush.msra.mxu0 %v413
    %775 = vmatmul.f32.gmra.mxu0 %v153
    %v776 = vpop.f32.mrf.mxu0
    %v777 = vadd.f32 %v757, %v776
    %778 = vdwg.mxu0
    %779 = vmatpush.msra.mxu0 %v537
    %780 = vmatpush.msra.mxu0 %v533
    %781 = vmatpush.msra.mxu0 %v529
    %782 = vmatpush.msra.mxu0 %v525
    %783 = vmatpush.msra.mxu0 %v521
    %784 = vmatpush.msra.mxu0 %v517
    %785 = vmatpush.msra.mxu0 %v513
    %786 = vmatpush.msra.mxu0 %v509
    %787 = vmatpush.msra.mxu0 %v505
    %788 = vmatpush.msra.mxu0 %v501
    %789 = vmatpush.msra.mxu0 %v497
    %790 = vmatpush.msra.mxu0 %v493
    %791 = vmatpush.msra.mxu0 %v489
    %792 = vmatpush.msra.mxu0 %v485
    %793 = vmatpush.msra.mxu0 %v481
    %794 = vmatpush.msra.mxu0 %v477
    %795 = vmatmul.f32.gmra.mxu0 %v154
    %v796 = vpop.f32.mrf.mxu0
    %v797 = vadd.f32 %v777, %v796
    %798 = vdwg.mxu0
    %799 = vmatpush.msra.mxu0 %v601
    %800 = vmatpush.msra.mxu0 %v597
    %801 = vmatpush.msra.mxu0 %v593
    %802 = vmatpush.msra.mxu0 %v589
    %803 = vmatpush.msra.mxu0 %v585
    %804 = vmatpush.msra.mxu0 %v581
    %805 = vmatpush.msra.mxu0 %v577
    %806 = vmatpush.msra.mxu0 %v573
    %807 = vmatpush.msra.mxu0 %v569
    %808 = vmatpush.msra.mxu0 %v565
    %809 = vmatpush.msra.mxu0 %v561
    %810 = vmatpush.msra.mxu0 %v557
    %811 = vmatpush.msra.mxu0 %v553
    %812 = vmatpush.msra.mxu0 %v549
    %813 = vmatpush.msra.mxu0 %v545
    %814 = vmatpush.msra.mxu0 %v541
    %815 = vmatmul.f32.gmra.mxu0 %v155
    %v816 = vpop.f32.mrf.mxu0
    %v817 = vadd.f32 %v797, %v816
    %818 = vdwg.mxu0
    %819 = vmatpush.msra.mxu0 %v665
    %820 = vmatpush.msra.mxu0 %v661
    %821 = vmatpush.msra.mxu0 %v657
    %822 = vmatpush.msra.mxu0 %v653
    %823 = vmatpush.msra.mxu0 %v649
    %824 = vmatpush.msra.mxu0 %v645
    %825 = vmatpush.msra.mxu0 %v641
    %826 = vmatpush.msra.mxu0 %v637
    %827 = vmatpush.msra.mxu0 %v633
    %828 = vmatpush.msra.mxu0 %v629
    %829 = vmatpush.msra.mxu0 %v625
    %830 = vmatpush.msra.mxu0 %v621
    %831 = vmatpush.msra.mxu0 %v617
    %832 = vmatpush.msra.mxu0 %v613
    %833 = vmatpush.msra.mxu0 %v609
    %834 = vmatpush.msra.mxu0 %v605
    %835 = vmatmul.f32.gmra.mxu0 %v156
    %v836 = vpop.f32.mrf.mxu0
    %v837 = vadd.f32 %v817, %v836
    %838 = vdwg.mxu0
    %839 = vmatpush.msra.mxu0 %v218
    %840 = vmatpush.msra.mxu0 %v214
    %841 = vmatpush.msra.mxu0 %v210
    %842 = vmatpush.msra.mxu0 %v206
    %843 = vmatpush.msra.mxu0 %v202
    %844 = vmatpush.msra.mxu0 %v198
    %845 = vmatpush.msra.mxu0 %v194
    %846 = vmatpush.msra.mxu0 %v190
    %847 = vmatpush.msra.mxu0 %v186
    %848 = vmatpush.msra.mxu0 %v182
    %849 = vmatpush.msra.mxu0 %v178
    %850 = vmatpush.msra.mxu0 %v174
    %851 = vmatpush.msra.mxu0 %v170
    %852 = vmatpush.msra.mxu0 %v166
    %853 = vmatpush.msra.mxu0 %v162
    %854 = vmatpush.msra.mxu0 %v158
    %855 = vmatmul.f32.gmra.mxu0 %v149
    %v856 = vpop.f32.mrf.mxu0
    %v857 = vadd.f32 %v672, %v856
    %858 = vdwg.mxu0
    %859 = vmatpush.msra.mxu0 %v282
    %860 = vmatpush.msra.mxu0 %v278
    %861 = vmatpush.msra.mxu0 %v274
    %862 = vmatpush.msra.mxu0 %v270
    %863 = vmatpush.msra.mxu0 %v266
    %864 = vmatpush.msra.mxu0 %v262
    %865 = vmatpush.msra.mxu0 %v258
    %866 = vmatpush.msra.mxu0 %v254
    %867 = vmatpush.msra.mxu0 %v250
    %868 = vmatpush.msra.mxu0 %v246
    %869 = vmatpush.msra.mxu0 %v242
    %870 = vmatpush.msra.mxu0 %v238
    %871 = vmatpush.msra.mxu0 %v234
    %872 = vmatpush.msra.mxu0 %v230
    %873 = vmatpush.msra.mxu0 %v226
    %874 = vmatpush.msra.mxu0 %v222
    %875 = vmatmul.f32.gmra.mxu0 %v150
    %v876 = vpop.f32.mrf.mxu0
    %v877 = vadd.f32 %v857, %v876
    %878 = vdwg.mxu0
    %879 = vmatpush.msra.mxu0 %v346
    %880 = vmatpush.msra.mxu0 %v342
    %881 = vmatpush.msra.mxu0 %v338
    %882 = vmatpush.msra.mxu0 %v334
    %883 = vmatpush.msra.mxu0 %v330
    %884 = vmatpush.msra.mxu0 %v326
    %885 = vmatpush.msra.mxu0 %v322
    %886 = vmatpush.msra.mxu0 %v318
    %887 = vmatpush.msra.mxu0 %v314
    %888 = vmatpush.msra.mxu0 %v310
    %889 = vmatpush.msra.mxu0 %v306
    %890 = vmatpush.msra.mxu0 %v302
    %891 = vmatpush.msra.mxu0 %v298
    %892 = vmatpush.msra.mxu0 %v294
    %893 = vmatpush.msra.mxu0 %v290
    %894 = vmatpush.msra.mxu0 %v286
    %895 = vmatmul.f32.gmra.mxu0 %v151
    %v896 = vpop.f32.mrf.mxu0
    %v897 = vadd.f32 %v877, %v896
    %898 = vdwg.mxu0
    %899 = vmatpush.msra.mxu0 %v410
    %900 = vmatpush.msra.mxu0 %v406
    %901 = vmatpush.msra.mxu0 %v402
    %902 = vmatpush.msra.mxu0 %v398
    %903 = vmatpush.msra.mxu0 %v394
    %904 = vmatpush.msra.mxu0 %v390
    %905 = vmatpush.msra.mxu0 %v386
    %906 = vmatpush.msra.mxu0 %v382
    %907 = vmatpush.msra.mxu0 %v378
    %908 = vmatpush.msra.mxu0 %v374
    %909 = vmatpush.msra.mxu0 %v370
    %910 = vmatpush.msra.mxu0 %v366
    %911 = vmatpush.msra.mxu0 %v362
    %912 = vmatpush.msra.mxu0 %v358
    %913 = vmatpush.msra.mxu0 %v354
    %914 = vmatpush.msra.mxu0 %v350
    %915 = vmatmul.f32.gmra.mxu0 %v152
    %v916 = vpop.f32.mrf.mxu0
    %v917 = vadd.f32 %v897, %v916
    %918 = vdwg.mxu0
    %919 = vmatpush.msra.mxu0 %v474
    %920 = vmatpush.msra.mxu0 %v470
    %921 = vmatpush.msra.mxu0 %v466
    %922 = vmatpush.msra.mxu0 %v462
    %923 = vmatpush.msra.mxu0 %v458
    %924 = vmatpush.msra.mxu0 %v454
    %925 = vmatpush.msra.mxu0 %v450
    %926 = vmatpush.msra.mxu0 %v446
    %927 = vmatpush.msra.mxu0 %v442
    %928 = vmatpush.msra.mxu0 %v438
    %929 = vmatpush.msra.mxu0 %v434
    %930 = vmatpush.msra.mxu0 %v430
    %931 = vmatpush.msra.mxu0 %v426
    %932 = vmatpush.msra.mxu0 %v422
    %933 = vmatpush.msra.mxu0 %v418
    %934 = vmatpush.msra.mxu0 %v414
    %935 = vmatmul.f32.gmra.mxu0 %v153
    %v936 = vpop.f32.mrf.mxu0
    %v937 = vadd.f32 %v917, %v936
    %938 = vdwg.mxu0
    %939 = vmatpush.msra.mxu0 %v538
    %940 = vmatpush.msra.mxu0 %v534
    %941 = vmatpush.msra.mxu0 %v530
    %942 = vmatpush.msra.mxu0 %v526
    %943 = vmatpush.msra.mxu0 %v522
    %944 = vmatpush.msra.mxu0 %v518
    %945 = vmatpush.msra.mxu0 %v514
    %946 = vmatpush.msra.mxu0 %v510
    %947 = vmatpush.msra.mxu0 %v506
    %948 = vmatpush.msra.mxu0 %v502
    %949 = vmatpush.msra.mxu0 %v498
    %950 = vmatpush.msra.mxu0 %v494
    %951 = vmatpush.msra.mxu0 %v490
    %952 = vmatpush.msra.mxu0 %v486
    %953 = vmatpush.msra.mxu0 %v482
    %954 = vmatpush.msra.mxu0 %v478
    %955 = vmatmul.f32.gmra.mxu0 %v154
    %v956 = vpop.f32.mrf.mxu0
    %v957 = vadd.f32 %v937, %v956
    %958 = vdwg.mxu0
    %959 = vmatpush.msra.mxu0 %v602
    %960 = vmatpush.msra.mxu0 %v598
    %961 = vmatpush.msra.mxu0 %v594
    %962 = vmatpush.msra.mxu0 %v590
    %963 = vmatpush.msra.mxu0 %v586
    %964 = vmatpush.msra.mxu0 %v582
    %965 = vmatpush.msra.mxu0 %v578
    %966 = vmatpush.msra.mxu0 %v574
    %967 = vmatpush.msra.mxu0 %v570
    %968 = vmatpush.msra.mxu0 %v566
    %969 = vmatpush.msra.mxu0 %v562
    %970 = vmatpush.msra.mxu0 %v558
    %971 = vmatpush.msra.mxu0 %v554
    %972 = vmatpush.msra.mxu0 %v550
    %973 = vmatpush.msra.mxu0 %v546
    %974 = vmatpush.msra.mxu0 %v542
    %975 = vmatmul.f32.gmra.mxu0 %v155
    %v976 = vpop.f32.mrf.mxu0
    %v977 = vadd.f32 %v957, %v976
    %978 = vdwg.mxu0
    %979 = vmatpush.msra.mxu0 %v666
    %980 = vmatpush.msra.mxu0 %v662
    %981 = vmatpush.msra.mxu0 %v658
    %982 = vmatpush.msra.mxu0 %v654
    %983 = vmatpush.msra.mxu0 %v650
    %984 = vmatpush.msra.mxu0 %v646
    %985 = vmatpush.msra.mxu0 %v642
    %986 = vmatpush.msra.mxu0 %v638
    %987 = vmatpush.msra.mxu0 %v634
    %988 = vmatpush.msra.mxu0 %v630
    %989 = vmatpush.msra.mxu0 %v626
    %990 = vmatpush.msra.mxu0 %v622
    %991 = vmatpush.msra.mxu0 %v618
    %992 = vmatpush.msra.mxu0 %v614
    %993 = vmatpush.msra.mxu0 %v610
    %994 = vmatpush.msra.mxu0 %v606
    %995 = vmatmul.f32.gmra.mxu0 %v156
    %v996 = vpop.f32.mrf.mxu0
    %v997 = vadd.f32 %v977, %v996
    %998 = vdwg.mxu0
    %999 = vmatpush.msra.mxu0 %v219
    %1000 = vmatpush.msra.mxu0 %v215
    %1001 = vmatpush.msra.mxu0 %v211
    %1002 = vmatpush.msra.mxu0 %v207
    %1003 = vmatpush.msra.mxu0 %v203
    %1004 = vmatpush.msra.mxu0 %v199
    %1005 = vmatpush.msra.mxu0 %v195
    %1006 = vmatpush.msra.mxu0 %v191
    %1007 = vmatpush.msra.mxu0 %v187
    %1008 = vmatpush.msra.mxu0 %v183
    %1009 = vmatpush.msra.mxu0 %v179
    %1010 = vmatpush.msra.mxu0 %v175
    %1011 = vmatpush.msra.mxu0 %v171
    %1012 = vmatpush.msra.mxu0 %v167
    %1013 = vmatpush.msra.mxu0 %v163
    %1014 = vmatpush.msra.mxu0 %v159
    %1015 = vmatmul.f32.gmra.mxu0 %v149
    %v1016 = vpop.f32.mrf.mxu0
    %v1017 = vadd.f32 %v673, %v1016
    %1018 = vdwg.mxu0
    %1019 = vmatpush.msra.mxu0 %v283
    %1020 = vmatpush.msra.mxu0 %v279
    %1021 = vmatpush.msra.mxu0 %v275
    %1022 = vmatpush.msra.mxu0 %v271
    %1023 = vmatpush.msra.mxu0 %v267
    %1024 = vmatpush.msra.mxu0 %v263
    %1025 = vmatpush.msra.mxu0 %v259
    %1026 = vmatpush.msra.mxu0 %v255
    %1027 = vmatpush.msra.mxu0 %v251
    %1028 = vmatpush.msra.mxu0 %v247
    %1029 = vmatpush.msra.mxu0 %v243
    %1030 = vmatpush.msra.mxu0 %v239
    %1031 = vmatpush.msra.mxu0 %v235
    %1032 = vmatpush.msra.mxu0 %v231
    %1033 = vmatpush.msra.mxu0 %v227
    %1034 = vmatpush.msra.mxu0 %v223
    %1035 = vmatmul.f32.gmra.mxu0 %v150
    %v1036 = vpop.f32.mrf.mxu0
    %v1037 = vadd.f32 %v1017, %v1036
    %1038 = vdwg.mxu0
    %1039 = vmatpush.msra.mxu0 %v347
    %1040 = vmatpush.msra.mxu0 %v343
    %1041 = vmatpush.msra.mxu0 %v339
    %1042 = vmatpush.msra.mxu0 %v335
    %1043 = vmatpush.msra.mxu0 %v331
    %1044 = vmatpush.msra.mxu0 %v327
    %1045 = vmatpush.msra.mxu0 %v323
    %1046 = vmatpush.msra.mxu0 %v319
    %1047 = vmatpush.msra.mxu0 %v315
    %1048 = vmatpush.msra.mxu0 %v311
    %1049 = vmatpush.msra.mxu0 %v307
    %1050 = vmatpush.msra.mxu0 %v303
    %1051 = vmatpush.msra.mxu0 %v299
    %1052 = vmatpush.msra.mxu0 %v295
    %1053 = vmatpush.msra.mxu0 %v291
    %1054 = vmatpush.msra.mxu0 %v287
    %1055 = vmatmul.f32.gmra.mxu0 %v151
    %v1056 = vpop.f32.mrf.mxu0
    %v1057 = vadd.f32 %v1037, %v1056
    %1058 = vdwg.mxu0
    %1059 = vmatpush.msra.mxu0 %v411
    %1060 = vmatpush.msra.mxu0 %v407
    %1061 = vmatpush.msra.mxu0 %v403
    %1062 = vmatpush.msra.mxu0 %v399
    %1063 = vmatpush.msra.mxu0 %v395
    %1064 = vmatpush.msra.mxu0 %v391
    %1065 = vmatpush.msra.mxu0 %v387
    %1066 = vmatpush.msra.mxu0 %v383
    %1067 = vmatpush.msra.mxu0 %v379
    %1068 = vmatpush.msra.mxu0 %v375
    %1069 = vmatpush.msra.mxu0 %v371
    %1070 = vmatpush.msra.mxu0 %v367
    %1071 = vmatpush.msra.mxu0 %v363
    %1072 = vmatpush.msra.mxu0 %v359
    %1073 = vmatpush.msra.mxu0 %v355
    %1074 = vmatpush.msra.mxu0 %v351
    %1075 = vmatmul.f32.gmra.mxu0 %v152
    %v1076 = vpop.f32.mrf.mxu0
    %v1077 = vadd.f32 %v1057, %v1076
    %1078 = vdwg.mxu0
    %1079 = vmatpush.msra.mxu0 %v475
    %1080 = vmatpush.msra.mxu0 %v471
    %1081 = vmatpush.msra.mxu0 %v467
    %1082 = vmatpush.msra.mxu0 %v463
    %1083 = vmatpush.msra.mxu0 %v459
    %1084 = vmatpush.msra.mxu0 %v455
    %1085 = vmatpush.msra.mxu0 %v451
    %1086 = vmatpush.msra.mxu0 %v447
    %1087 = vmatpush.msra.mxu0 %v443
    %1088 = vmatpush.msra.mxu0 %v439
    %1089 = vmatpush.msra.mxu0 %v435
    %1090 = vmatpush.msra.mxu0 %v431
    %1091 = vmatpush.msra.mxu0 %v427
    %1092 = vmatpush.msra.mxu0 %v423
    %1093 = vmatpush.msra.mxu0 %v419
    %1094 = vmatpush.msra.mxu0 %v415
    %1095 = vmatmul.f32.gmra.mxu0 %v153
    %v1096 = vpop.f32.mrf.mxu0
    %v1097 = vadd.f32 %v1077, %v1096
    %1098 = vdwg.mxu0
    %1099 = vmatpush.msra.mxu0 %v539
    %1100 = vmatpush.msra.mxu0 %v535
    %1101 = vmatpush.msra.mxu0 %v531
    %1102 = vmatpush.msra.mxu0 %v527
    %1103 = vmatpush.msra.mxu0 %v523
    %1104 = vmatpush.msra.mxu0 %v519
    %1105 = vmatpush.msra.mxu0 %v515
    %1106 = vmatpush.msra.mxu0 %v511
    %1107 = vmatpush.msra.mxu0 %v507
    %1108 = vmatpush.msra.mxu0 %v503
    %1109 = vmatpush.msra.mxu0 %v499
    %1110 = vmatpush.msra.mxu0 %v495
    %1111 = vmatpush.msra.mxu0 %v491
    %1112 = vmatpush.msra.mxu0 %v487
    %1113 = vmatpush.msra.mxu0 %v483
    %1114 = vmatpush.msra.mxu0 %v479
    %1115 = vmatmul.f32.gmra.mxu0 %v154
    %v1116 = vpop.f32.mrf.mxu0
    %v1117 = vadd.f32 %v1097, %v1116
    %1118 = vdwg.mxu0
    %1119 = vmatpush.msra.mxu0 %v603
    %1120 = vmatpush.msra.mxu0 %v599
    %1121 = vmatpush.msra.mxu0 %v595
    %1122 = vmatpush.msra.mxu0 %v591
    %1123 = vmatpush.msra.mxu0 %v587
    %1124 = vmatpush.msra.mxu0 %v583
    %1125 = vmatpush.msra.mxu0 %v579
    %1126 = vmatpush.msra.mxu0 %v575
    %1127 = vmatpush.msra.mxu0 %v571
    %1128 = vmatpush.msra.mxu0 %v567
    %1129 = vmatpush.msra.mxu0 %v563
    %1130 = vmatpush.msra.mxu0 %v559
    %1131 = vmatpush.msra.mxu0 %v555
    %1132 = vmatpush.msra.mxu0 %v551
    %1133 = vmatpush.msra.mxu0 %v547
    %1134 = vmatpush.msra.mxu0 %v543
    %1135 = vmatmul.f32.gmra.mxu0 %v155
    %v1136 = vpop.f32.mrf.mxu0
    %v1137 = vadd.f32 %v1117, %v1136
    %1138 = vdwg.mxu0
    %1139 = vmatpush.msra.mxu0 %v667
    %1140 = vmatpush.msra.mxu0 %v663
    %1141 = vmatpush.msra.mxu0 %v659
    %1142 = vmatpush.msra.mxu0 %v655
    %1143 = vmatpush.msra.mxu0 %v651
    %1144 = vmatpush.msra.mxu0 %v647
    %1145 = vmatpush.msra.mxu0 %v643
    %1146 = vmatpush.msra.mxu0 %v639
    %1147 = vmatpush.msra.mxu0 %v635
    %1148 = vmatpush.msra.mxu0 %v631
    %1149 = vmatpush.msra.mxu0 %v627
    %1150 = vmatpush.msra.mxu0 %v623
    %1151 = vmatpush.msra.mxu0 %v619
    %1152 = vmatpush.msra.mxu0 %v615
    %1153 = vmatpush.msra.mxu0 %v611
    %1154 = vmatpush.msra.mxu0 %v607
    %1155 = vmatmul.f32.gmra.mxu0 %v156
    %v1156 = vpop.f32.mrf.mxu0
    %v1157 = vadd.f32 %v1137, %v1156
    %1158 = vdwg.mxu0
    %1159 = vmatpush.msra.mxu0 %v220
    %1160 = vmatpush.msra.mxu0 %v216
    %1161 = vmatpush.msra.mxu0 %v212
    %1162 = vmatpush.msra.mxu0 %v208
    %1163 = vmatpush.msra.mxu0 %v204
    %1164 = vmatpush.msra.mxu0 %v200
    %1165 = vmatpush.msra.mxu0 %v196
    %1166 = vmatpush.msra.mxu0 %v192
    %1167 = vmatpush.msra.mxu0 %v188
    %1168 = vmatpush.msra.mxu0 %v184
    %1169 = vmatpush.msra.mxu0 %v180
    %1170 = vmatpush.msra.mxu0 %v176
    %1171 = vmatpush.msra.mxu0 %v172
    %1172 = vmatpush.msra.mxu0 %v168
    %1173 = vmatpush.msra.mxu0 %v164
    %1174 = vmatpush.msra.mxu0 %v160
    %1175 = vmatmul.f32.gmra.mxu0 %v149
    %v1176 = vpop.f32.mrf.mxu0
    %v1177 = vadd.f32 %v674, %v1176
    %1178 = vdwg.mxu0
    %1179 = vmatpush.msra.mxu0 %v284
    %1180 = vmatpush.msra.mxu0 %v280
    %1181 = vmatpush.msra.mxu0 %v276
    %1182 = vmatpush.msra.mxu0 %v272
    %1183 = vmatpush.msra.mxu0 %v268
    %1184 = vmatpush.msra.mxu0 %v264
    %1185 = vmatpush.msra.mxu0 %v260
    %1186 = vmatpush.msra.mxu0 %v256
    %1187 = vmatpush.msra.mxu0 %v252
    %1188 = vmatpush.msra.mxu0 %v248
    %1189 = vmatpush.msra.mxu0 %v244
    %1190 = vmatpush.msra.mxu0 %v240
    %1191 = vmatpush.msra.mxu0 %v236
    %1192 = vmatpush.msra.mxu0 %v232
    %1193 = vmatpush.msra.mxu0 %v228
    %1194 = vmatpush.msra.mxu0 %v224
    %1195 = vmatmul.f32.gmra.mxu0 %v150
    %v1196 = vpop.f32.mrf.mxu0
    %v1197 = vadd.f32 %v1177, %v1196
    %1198 = vdwg.mxu0
    %1199 = vmatpush.msra.mxu0 %v348
    %1200 = vmatpush.msra.mxu0 %v344
    %1201 = vmatpush.msra.mxu0 %v340
    %1202 = vmatpush.msra.mxu0 %v336
    %1203 = vmatpush.msra.mxu0 %v332
    %1204 = vmatpush.msra.mxu0 %v328
    %1205 = vmatpush.msra.mxu0 %v324
    %1206 = vmatpush.msra.mxu0 %v320
    %1207 = vmatpush.msra.mxu0 %v316
    %1208 = vmatpush.msra.mxu0 %v312
    %1209 = vmatpush.msra.mxu0 %v308
    %1210 = vmatpush.msra.mxu0 %v304
    %1211 = vmatpush.msra.mxu0 %v300
    %1212 = vmatpush.msra.mxu0 %v296
    %1213 = vmatpush.msra.mxu0 %v292
    %1214 = vmatpush.msra.mxu0 %v288
    %1215 = vmatmul.f32.gmra.mxu0 %v151
    %v1216 = vpop.f32.mrf.mxu0
    %v1217 = vadd.f32 %v1197, %v1216
    %1218 = vdwg.mxu0
    %1219 = vmatpush.msra.mxu0 %v412
    %1220 = vmatpush.msra.mxu0 %v408
    %1221 = vmatpush.msra.mxu0 %v404
    %1222 = vmatpush.msra.mxu0 %v400
    %1223 = vmatpush.msra.mxu0 %v396
    %1224 = vmatpush.msra.mxu0 %v392
    %1225 = vmatpush.msra.mxu0 %v388
    %1226 = vmatpush.msra.mxu0 %v384
    %1227 = vmatpush.msra.mxu0 %v380
    %1228 = vmatpush.msra.mxu0 %v376
    %1229 = vmatpush.msra.mxu0 %v372
    %1230 = vmatpush.msra.mxu0 %v368
    %1231 = vmatpush.msra.mxu0 %v364
    %1232 = vmatpush.msra.mxu0 %v360
    %1233 = vmatpush.msra.mxu0 %v356
    %1234 = vmatpush.msra.mxu0 %v352
    %1235 = vmatmul.f32.gmra.mxu0 %v152
    %v1236 = vpop.f32.mrf.mxu0
    %v1237 = vadd.f32 %v1217, %v1236
    %1238 = vdwg.mxu0
    %1239 = vmatpush.msra.mxu0 %v476
    %1240 = vmatpush.msra.mxu0 %v472
    %1241 = vmatpush.msra.mxu0 %v468
    %1242 = vmatpush.msra.mxu0 %v464
    %1243 = vmatpush.msra.mxu0 %v460
    %1244 = vmatpush.msra.mxu0 %v456
    %1245 = vmatpush.msra.mxu0 %v452
    %1246 = vmatpush.msra.mxu0 %v448
    %1247 = vmatpush.msra.mxu0 %v444
    %1248 = vmatpush.msra.mxu0 %v440
    %1249 = vmatpush.msra.mxu0 %v436
    %1250 = vmatpush.msra.mxu0 %v432
    %1251 = vmatpush.msra.mxu0 %v428
    %1252 = vmatpush.msra.mxu0 %v424
    %1253 = vmatpush.msra.mxu0 %v420
    %1254 = vmatpush.msra.mxu0 %v416
    %1255 = vmatmul.f32.gmra.mxu0 %v153
    %v1256 = vpop.f32.mrf.mxu0
    %v1257 = vadd.f32 %v1237, %v1256
    %1258 = vdwg.mxu0
    %1259 = vmatpush.msra.mxu0 %v540
    %1260 = vmatpush.msra.mxu0 %v536
    %1261 = vmatpush.msra.mxu0 %v532
    %1262 = vmatpush.msra.mxu0 %v528
    %1263 = vmatpush.msra.mxu0 %v524
    %1264 = vmatpush.msra.mxu0 %v520
    %1265 = vmatpush.msra.mxu0 %v516
    %1266 = vmatpush.msra.mxu0 %v512
    %1267 = vmatpush.msra.mxu0 %v508
    %1268 = vmatpush.msra.mxu0 %v504
    %1269 = vmatpush.msra.mxu0 %v500
    %1270 = vmatpush.msra.mxu0 %v496
    %1271 = vmatpush.msra.mxu0 %v492
    %1272 = vmatpush.msra.mxu0 %v488
    %1273 = vmatpush.msra.mxu0 %v484
    %1274 = vmatpush.msra.mxu0 %v480
    %1275 = vmatmul.f32.gmra.mxu0 %v154
    %v1276 = vpop.f32.mrf.mxu0
    %v1277 = vadd.f32 %v1257, %v1276
    %1278 = vdwg.mxu0
    %1279 = vmatpush.msra.mxu0 %v604
    %1280 = vmatpush.msra.mxu0 %v600
    %1281 = vmatpush.msra.mxu0 %v596
    %1282 = vmatpush.msra.mxu0 %v592
    %1283 = vmatpush.msra.mxu0 %v588
    %1284 = vmatpush.msra.mxu0 %v584
    %1285 = vmatpush.msra.mxu0 %v580
    %1286 = vmatpush.msra.mxu0 %v576
    %1287 = vmatpush.msra.mxu0 %v572
    %1288 = vmatpush.msra.mxu0 %v568
    %1289 = vmatpush.msra.mxu0 %v564
    %1290 = vmatpush.msra.mxu0 %v560
    %1291 = vmatpush.msra.mxu0 %v556
    %1292 = vmatpush.msra.mxu0 %v552
    %1293 = vmatpush.msra.mxu0 %v548
    %1294 = vmatpush.msra.mxu0 %v544
    %1295 = vmatmul.f32.gmra.mxu0 %v155
    %v1296 = vpop.f32.mrf.mxu0
    %v1297 = vadd.f32 %v1277, %v1296
    %1298 = vdwg.mxu0
    %1299 = vmatpush.msra.mxu0 %v668
    %1300 = vmatpush.msra.mxu0 %v664
    %1301 = vmatpush.msra.mxu0 %v660
    %1302 = vmatpush.msra.mxu0 %v656
    %1303 = vmatpush.msra.mxu0 %v652
    %1304 = vmatpush.msra.mxu0 %v648
    %1305 = vmatpush.msra.mxu0 %v644
    %1306 = vmatpush.msra.mxu0 %v640
    %1307 = vmatpush.msra.mxu0 %v636
    %1308 = vmatpush.msra.mxu0 %v632
    %1309 = vmatpush.msra.mxu0 %v628
    %1310 = vmatpush.msra.mxu0 %v624
    %1311 = vmatpush.msra.mxu0 %v620
    %1312 = vmatpush.msra.mxu0 %v616
    %1313 = vmatpush.msra.mxu0 %v612
    %1314 = vmatpush.msra.mxu0 %v608
    %1315 = vmatmul.f32.gmra.mxu0 %v156
    %v1316 = vpop.f32.mrf.mxu0
    %v1317 = vadd.f32 %v1297, %v1316
    %1318 = vdwg.mxu0
    %v1319 = vmax.f32 %v837, 0.0
    %v1320 = vmax.f32 %v997, 0.0
    %v1321 = vmax.f32 %v1157, 0.0
    %v1322 = vmax.f32 %v1317, 0.0
    %v1323 = vld [vmem:[#allocation6] sm:$0xff]
    %v1324 = vld [vmem:[#allocation6 + $0x8] sm:$0xff]
    %v1325 = vld [vmem:[#allocation6 + $0x10] sm:$0xff]
    %v1326 = vld [vmem:[#allocation6 + $0x18] sm:$0xff]
    %v1327 = vld [vmem:[#allocation6 + $0x20] sm:$0xff]
    %v1328 = vld [vmem:[#allocation6 + $0x28] sm:$0xff]
    %v1329 = vld [vmem:[#allocation6 + $0x30] sm:$0xff]
    %v1330 = vld [vmem:[#allocation6 + $0x38] sm:$0xff]
    %v1331 = vld [vmem:[#allocation6 + $0x40] sm:$0xff]
    %v1332 = vld [vmem:[#allocation6 + $0x48] sm:$0xff]
    %v1333 = vld [vmem:[#allocation6 + $0x50] sm:$0xff]
    %v1334 = vld [vmem:[#allocation6 + $0x58] sm:$0xff]
    %v1335 = vld [vmem:[#allocation6 + $0x60] sm:$0xff]
    %v1336 = vld [vmem:[#allocation6 + $0x68] sm:$0xff]
    %v1337 = vld [vmem:[#allocation6 + $0x70] sm:$0xff]
    %v1338 = vld [vmem:[#allocation6 + $0x78] sm:$0xff]
    %v1339 = vld [vmem:[#allocation6 + $0x80] sm:$0xff]
    %v1340 = vld [vmem:[#allocation6 + $0x88] sm:$0xff]
    %v1341 = vld [vmem:[#allocation6 + $0x90] sm:$0xff]
    %v1342 = vld [vmem:[#allocation6 + $0x98] sm:$0xff]
    %v1343 = vld [vmem:[#allocation6 + $0xa0] sm:$0xff]
    %v1344 = vld [vmem:[#allocation6 + $0xa8] sm:$0xff]
    %v1345 = vld [vmem:[#allocation6 + $0xb0] sm:$0xff]
    %v1346 = vld [vmem:[#allocation6 + $0xb8] sm:$0xff]
    %v1347 = vld [vmem:[#allocation6 + $0xc0] sm:$0xff]
    %v1348 = vld [vmem:[#allocation6 + $0xc8] sm:$0xff]
    %v1349 = vld [vmem:[#allocation6 + $0xd0] sm:$0xff]
    %v1350 = vld [vmem:[#allocation6 + $0xd8] sm:$0xff]
    %v1351 = vld [vmem:[#allocation6 + $0xe0] sm:$0xff]
    %v1352 = vld [vmem:[#allocation6 + $0xe8] sm:$0xff]
    %v1353 = vld [vmem:[#allocation6 + $0xf0] sm:$0xff]
    %v1354 = vld [vmem:[#allocation6 + $0xf8] sm:$0xff]
    %v1355 = vld [vmem:[#allocation6 + $0x100] sm:$0xff]
    %v1356 = vld [vmem:[#allocation6 + $0x108] sm:$0xff]
    %v1357 = vld [vmem:[#allocation6 + $0x110] sm:$0xff]
    %v1358 = vld [vmem:[#allocation6 + $0x118] sm:$0xff]
    %v1359 = vld [vmem:[#allocation6 + $0x120] sm:$0xff]
    %v1360 = vld [vmem:[#allocation6 + $0x128] sm:$0xff]
    %v1361 = vld [vmem:[#allocation6 + $0x130] sm:$0xff]
    %v1362 = vld [vmem:[#allocation6 + $0x138] sm:$0xff]
    %v1363 = vld [vmem:[#allocation6 + $0x140] sm:$0xff]
    %v1364 = vld [vmem:[#allocation6 + $0x148] sm:$0xff]
    %v1365 = vld [vmem:[#allocation6 + $0x150] sm:$0xff]
    %v1366 = vld [vmem:[#allocation6 + $0x158] sm:$0xff]
    %v1367 = vld [vmem:[#allocation6 + $0x160] sm:$0xff]
    %v1368 = vld [vmem:[#allocation6 + $0x168] sm:$0xff]
    %v1369 = vld [vmem:[#allocation6 + $0x170] sm:$0xff]
    %v1370 = vld [vmem:[#allocation6 + $0x178] sm:$0xff]
    %v1371 = vld [vmem:[#allocation6 + $0x180] sm:$0xff]
    %v1372 = vld [vmem:[#allocation6 + $0x188] sm:$0xff]
    %v1373 = vld [vmem:[#allocation6 + $0x190] sm:$0xff]
    %v1374 = vld [vmem:[#allocation6 + $0x198] sm:$0xff]
    %v1375 = vld [vmem:[#allocation6 + $0x1a0] sm:$0xff]
    %v1376 = vld [vmem:[#allocation6 + $0x1a8] sm:$0xff]
    %v1377 = vld [vmem:[#allocation6 + $0x1b0] sm:$0xff]
    %v1378 = vld [vmem:[#allocation6 + $0x1b8] sm:$0xff]
    %v1379 = vld [vmem:[#allocation6 + $0x1c0] sm:$0xff]
    %v1380 = vld [vmem:[#allocation6 + $0x1c8] sm:$0xff]
    %v1381 = vld [vmem:[#allocation6 + $0x1d0] sm:$0xff]
    %v1382 = vld [vmem:[#allocation6 + $0x1d8] sm:$0xff]
    %v1383 = vld [vmem:[#allocation6 + $0x1e0] sm:$0xff]
    %v1384 = vld [vmem:[#allocation6 + $0x1e8] sm:$0xff]
    %v1385 = vld [vmem:[#allocation6 + $0x1f0] sm:$0xff]
    %v1386 = vld [vmem:[#allocation6 + $0x1f8] sm:$0xff]
    %v1387 = vld [vmem:[#allocation7] sm:$0x1]
    %v1389 = vperm.slane %v1387, 0
    %1391 = vmatpush.msra.mxu0 %v1338
    %1392 = vmatpush.msra.mxu0 %v1337
    %1393 = vmatpush.msra.mxu0 %v1336
    %1394 = vmatpush.msra.mxu0 %v1335
    %1395 = vmatpush.msra.mxu0 %v1334
    %1396 = vmatpush.msra.mxu0 %v1333
    %1397 = vmatpush.msra.mxu0 %v1332
    %1398 = vmatpush.msra.mxu0 %v1331
    %1399 = vmatpush.msra.mxu0 %v1330
    %1400 = vmatpush.msra.mxu0 %v1329
    %1401 = vmatpush.msra.mxu0 %v1328
    %1402 = vmatpush.msra.mxu0 %v1327
    %1403 = vmatpush.msra.mxu0 %v1326
    %1404 = vmatpush.msra.mxu0 %v1325
    %1405 = vmatpush.msra.mxu0 %v1324
    %1406 = vmatpush.msra.mxu0 %v1323
    %1407 = vmatmul.f32.gmra.mxu0 %v1319
    %v1408 = vpop.f32.mrf.mxu0
    %v1409 = vadd.f32 %v1389, %v1408
    %1410 = vdwg.mxu0
    %1411 = vmatpush.msra.mxu0 %v1354
    %1412 = vmatpush.msra.mxu0 %v1353
    %1413 = vmatpush.msra.mxu0 %v1352
    %1414 = vmatpush.msra.mxu0 %v1351
    %1415 = vmatpush.msra.mxu0 %v1350
    %1416 = vmatpush.msra.mxu0 %v1349
    %1417 = vmatpush.msra.mxu0 %v1348
    %1418 = vmatpush.msra.mxu0 %v1347
    %1419 = vmatpush.msra.mxu0 %v1346
    %1420 = vmatpush.msra.mxu0 %v1345
    %1421 = vmatpush.msra.mxu0 %v1344
    %1422 = vmatpush.msra.mxu0 %v1343
    %1423 = vmatpush.msra.mxu0 %v1342
    %1424 = vmatpush.msra.mxu0 %v1341
    %1425 = vmatpush.msra.mxu0 %v1340
    %1426 = vmatpush.msra.mxu0 %v1339
    %1427 = vmatmul.f32.gmra.mxu0 %v1320
    %v1428 = vpop.f32.mrf.mxu0
    %v1429 = vadd.f32 %v1409, %v1428
    %1430 = vdwg.mxu0
    %1431 = vmatpush.msra.mxu0 %v1370
    %1432 = vmatpush.msra.mxu0 %v1369
    %1433 = vmatpush.msra.mxu0 %v1368
    %1434 = vmatpush.msra.mxu0 %v1367
    %1435 = vmatpush.msra.mxu0 %v1366
    %1436 = vmatpush.msra.mxu0 %v1365
    %1437 = vmatpush.msra.mxu0 %v1364
    %1438 = vmatpush.msra.mxu0 %v1363
    %1439 = vmatpush.msra.mxu0 %v1362
    %1440 = vmatpush.msra.mxu0 %v1361
    %1441 = vmatpush.msra.mxu0 %v1360
    %1442 = vmatpush.msra.mxu0 %v1359
    %1443 = vmatpush.msra.mxu0 %v1358
    %1444 = vmatpush.msra.mxu0 %v1357
    %1445 = vmatpush.msra.mxu0 %v1356
    %1446 = vmatpush.msra.mxu0 %v1355
    %1447 = vmatmul.f32.gmra.mxu0 %v1321
    %v1448 = vpop.f32.mrf.mxu0
    %v1449 = vadd.f32 %v1429, %v1448
    %1450 = vdwg.mxu0
    %1451 = vmatpush.msra.mxu0 %v1386
    %1452 = vmatpush.msra.mxu0 %v1385
    %1453 = vmatpush.msra.mxu0 %v1384
    %1454 = vmatpush.msra.mxu0 %v1383
    %1455 = vmatpush.msra.mxu0 %v1382
    %1456 = vmatpush.msra.mxu0 %v1381
    %1457 = vmatpush.msra.mxu0 %v1380
    %1458 = vmatpush.msra.mxu0 %v1379
    %1459 = vmatpush.msra.mxu0 %v1378
    %1460 = vmatpush.msra.mxu0 %v1377
    %1461 = vmatpush.msra.mxu0 %v1376
    %1462 = vmatpush.msra.mxu0 %v1375
    %1463 = vmatpush.msra.mxu0 %v1374
    %1464 = vmatpush.msra.mxu0 %v1373
    %1465 = vmatpush.msra.mxu0 %v1372
    %1466 = vmatpush.msra.mxu0 %v1371
    %1467 = vmatmul.f32.gmra.mxu0 %v1322
    %v1468 = vpop.f32.mrf.mxu0
    %v1469 = vadd.f32 %v1449, %v1468
    %1470 = vdwg.mxu0
    %v1471 = vmax.f32 %v1469, 0.0
    %v1472 = vld [vmem:[#allocation9] sm:$0xff]
    %v1473 = vld [vmem:[#allocation9 + $0x8] sm:$0xff]
    %v1474 = vld [vmem:[#allocation9 + $0x10] sm:$0xff]
    %v1475 = vld [vmem:[#allocation9 + $0x18] sm:$0xff]
    %v1476 = vld [vmem:[#allocation9 + $0x20] sm:$0xff]
    %v1477 = vld [vmem:[#allocation9 + $0x28] sm:$0xff]
    %v1478 = vld [vmem:[#allocation9 + $0x30] sm:$0xff]
    %v1479 = vld [vmem:[#allocation9 + $0x38] sm:$0xff]
    %v1480 = vld [vmem:[#allocation9 + $0x40] sm:$0xff]
    %v1481 = vld [vmem:[#allocation9 + $0x48] sm:$0xff]
    %v1482 = vld [vmem:[#allocation9 + $0x50] sm:$0xff]
    %v1483 = vld [vmem:[#allocation9 + $0x58] sm:$0xff]
    %v1484 = vld [vmem:[#allocation9 + $0x60] sm:$0xff]
    %v1485 = vld [vmem:[#allocation9 + $0x68] sm:$0xff]
    %v1486 = vld [vmem:[#allocation9 + $0x70] sm:$0xff]
    %v1487 = vld [vmem:[#allocation9 + $0x78] sm:$0xff]
    %v1488 = vld [vmem:[#allocation10] sm:$0x1]
    %v1490 = vperm.slane %v1488, 0
    %1492 = vmatpush.msra.mxu0 %v1487
    %1493 = vmatpush.msra.mxu0 %v1486
    %1494 = vmatpush.msra.mxu0 %v1485
    %1495 = vmatpush.msra.mxu0 %v1484
    %1496 = vmatpush.msra.mxu0 %v1483
    %1497 = vmatpush.msra.mxu0 %v1482
    %1498 = vmatpush.msra.mxu0 %v1481
    %1499 = vmatpush.msra.mxu0 %v1480
    %1500 = vmatpush.msra.mxu0 %v1479
    %1501 = vmatpush.msra.mxu0 %v1478
    %1502 = vmatpush.msra.mxu0 %v1477
    %1503 = vmatpush.msra.mxu0 %v1476
    %1504 = vmatpush.msra.mxu0 %v1475
    %1505 = vmatpush.msra.mxu0 %v1474
    %1506 = vmatpush.msra.mxu0 %v1473
    %1507 = vmatpush.msra.mxu0 %v1472
    %1508 = vmatmul.f32.gmra.mxu0 %v1471
    %v1509 = vpop.f32.mrf.mxu0
    %v1510 = vadd.f32 %v1490, %v1509
    %1511 = vdwg.mxu0
    %v1512 = vmax.f32 %v1510, 0.0
    %v1513 = vld [vmem:[#allocation12] sm:$0xff]
    %v1514 = vld [vmem:[#allocation12 + $0x8] sm:$0xff]
    %v1515 = vld [vmem:[#allocation12 + $0x10] sm:$0xff]
    %v1516 = vld [vmem:[#allocation12 + $0x18] sm:$0xff]
    %v1517 = vld [vmem:[#allocation12 + $0x20] sm:$0xff]
    %v1518 = vld [vmem:[#allocation12 + $0x28] sm:$0xff]
    %v1519 = vld [vmem:[#allocation12 + $0x30] sm:$0xff]
    %v1520 = vld [vmem:[#allocation12 + $0x38] sm:$0xff]
    %v1521 = vld [vmem:[#allocation12 + $0x40] sm:$0xff]
    %v1522 = vld [vmem:[#allocation12 + $0x48] sm:$0xff]
    %v1523 = vld [vmem:[#allocation12 + $0x50] sm:$0xff]
    %v1524 = vld [vmem:[#allocation12 + $0x58] sm:$0xff]
    %v1525 = vld [vmem:[#allocation12 + $0x60] sm:$0xff]
    %v1526 = vld [vmem:[#allocation12 + $0x68] sm:$0xff]
    %v1527 = vld [vmem:[#allocation12 + $0x70] sm:$0xff]
    %v1528 = vld [vmem:[#allocation12 + $0x78] sm:$0xff]
    %v1529 = vld [vmem:[#allocation13] sm:$0x1]
    %v1531 = vperm.slane %v1529, 0
    %1533 = vmatpush.msra.mxu0 %v1528
    %1534 = vmatpush.msra.mxu0 %v1527
    %1535 = vmatpush.msra.mxu0 %v1526
    %1536 = vmatpush.msra.mxu0 %v1525
    %1537 = vmatpush.msra.mxu0 %v1524
    %1538 = vmatpush.msra.mxu0 %v1523
    %1539 = vmatpush.msra.mxu0 %v1522
    %1540 = vmatpush.msra.mxu0 %v1521
    %1541 = vmatpush.msra.mxu0 %v1520
    %1542 = vmatpush.msra.mxu0 %v1519
    %1543 = vmatpush.msra.mxu0 %v1518
    %1544 = vmatpush.msra.mxu0 %v1517
    %1545 = vmatpush.msra.mxu0 %v1516
    %1546 = vmatpush.msra.mxu0 %v1515
    %1547 = vmatpush.msra.mxu0 %v1514
    %1548 = vmatpush.msra.mxu0 %v1513
    %1549 = vmatmul.f32.gmra.mxu0 %v1512
    %v1550 = vpop.f32.mrf.mxu0
    %v1551 = vadd.f32 %v1531, %v1550
    %1552 = vdwg.mxu0
    %1553 = vst [vmem:[%s9] sm:$0xff] %v1551
    // Predicated region
    $region70: #{forward.1} parent=1 // pred_check
      _
    $region71: #{forward.1} parent=1 // pred_check_branch
      %1555 = sbr.rel (0) target = $region73
    $region72: #{forward.1} parent=1 // pred_region
      _
    $region73: #{forward.1} parent=1 // pred_fallthru
      _
    // Predicated region
    $region74: #{forward.1} parent=1 // pred_check
      _
    $region75: #{forward.1} parent=1 // pred_check_branch
      %1557 = sbr.rel (0) target = $region77
    $region76: #{forward.1} parent=1 // pred_region
      _
    $region77: #{forward.1} parent=1 // pred_fallthru
      _
    %1558 = vsyncpa [#allocation3], 1
    %1559 = vsyncpa [#allocation5], 1
    %1560 = vsyncpa [#allocation8], 1
    %1561 = vsyncpa [#allocation11], 1
    %1562 = vsyncpa [#allocation14], 1

</llo_original>
